<compile_context>
chip_gen: v5e
topology: v5e:2x2
jax: 0.10.0
libtpu: 0.0.40
codegen_flags: <defaults>
</compile_context>

<pallas_src>
import jax
import jax.numpy as jnp
from jax.experimental import pallas as pl
from jax.experimental.pallas import tpu as pltpu


ROOT_IDX = 0
NECK_IDX = 9
D = 3  # xyz
SKELETON = ((0, 1), (1, 2), (2, 3), (3, 4), (0, 5), (5, 6), (6, 7), (7, 8),
            (0, 9), (9, 10), (10, 11), (11, 12), (0, 13), (13, 14), (14, 15),
            (15, 16), (0, 17), (17, 18), (18, 19), (19, 20))


# ---------------------------------------------------------------------------
# Kernel: fused per-sample joint losses.
#   inputs : pred / gt joints as (J*3, TB) lane-dense slabs (row = joint*3+xyz)
#   output : (3, TB) rows = [ l1_joint , bone_len , global_rot ]
# ---------------------------------------------------------------------------
def _fused_joint_losses_kernel(p_ref, g_ref, o_ref):
    p = p_ref[...].astype(jnp.float32)          # (J*3, TB)
    g = g_ref[...].astype(jnp.float32)          # (J*3, TB)

    # --- JointLoss(loss='l1'): sum over joints and xyz of |pred - gt| ---
    l1 = jnp.sum(jnp.abs(p - g), axis=0, keepdims=True)            # (1, TB)

    def sq_norm3(v):  # (3, TB) -> (1, TB), explicit row FMAs (stays in VALU)
        return v[0:1] * v[0:1] + v[1:2] * v[1:2] + v[2:3] * v[2:3]

    # --- BoneLengthLoss: sum_i (||pred_bone_i|| - ||gt_bone_i||)^2 ---
    bone = jnp.zeros_like(l1)
    for a, b in SKELETON:                        # static 20-bone unrolled loop
        dp = p[3 * a:3 * a + 3] - p[3 * b:3 * b + 3]
        dg = g[3 * a:3 * a + 3] - g[3 * b:3 * b + 3]
        diff = jnp.sqrt(sq_norm3(dp)) - jnp.sqrt(sq_norm3(dg))
        bone = bone + diff * diff

    # --- GlobalRotLoss: 1 - cos(angle between pred / gt spine (neck - root)) ---
    sp = p[3 * NECK_IDX:3 * NECK_IDX + 3] - p[3 * ROOT_IDX:3 * ROOT_IDX + 3]
    sg = g[3 * NECK_IDX:3 * NECK_IDX + 3] - g[3 * ROOT_IDX:3 * ROOT_IDX + 3]
    dot = sp[0:1] * sg[0:1] + sp[1:2] * sg[1:2] + sp[2:3] * sg[2:3]
    # Two rsqrts (EUP) instead of sqrt+sqrt+divide; avoids squared-norm product
    # under/overflow.  No epsilon, matching the torch reference.
    grot = 1.0 - dot * jax.lax.rsqrt(sq_norm3(sp)) * jax.lax.rsqrt(sq_norm3(sg))

    o_ref[...] = jnp.concatenate([l1, bone, grot], axis=0)          # (3, TB)


# ---------------------------------------------------------------------------
# Wrapper
# ---------------------------------------------------------------------------
def _round_up(x, m):
    return ((x + m - 1) // m) * m


def _joint_slab(x, b_pad):
    """(B, J, 3) -> (J*3, b_pad) lane-dense slab. One reshape+transpose(+pad)."""
    B = x.shape[0]
    s = x.reshape(B, -1).T                       # (J*3, B), layout plumbing only
    if b_pad > B:
        s = jnp.pad(s, ((0, 0), (0, b_pad - B)))
    return s


def _vmem_limit_bytes(rows, tb, in_dtype, pipelined):
    rows_in = _round_up(rows, 8)                 # sublane-padded input rows
    per_set = (2 * rows_in * jnp.dtype(in_dtype).itemsize + 8 * 4) * tb
    nbuf = 2 if pipelined else 1                 # double-buffer only when gridded
    return int(min(max(per_set * nbuf + (4 << 20), 8 << 20), 48 << 20))


def fused_joint_losses(pred, gt, *, block_b=16384):
    """pred, gt: (B, J, 3) joints (J >= 21). Returns per-sample f32 vectors
    (l1_joint, bone_len, global_rot), each of shape (B,)."""
    B, J, d = pred.shape
    assert gt.shape == (B, J, d) and d == D and J > max(max(b) for b in SKELETON)
    rows = J * D

    # Lane tile: multiple of 128, capped so the (double-buffered) footprint
    # stays well under v7x's 64 MiB VMEM.
    tb = max(128, min(_round_up(block_b, 128), 32768))
    b128 = _round_up(B, 128)

    if b128 <= tb:
        # Single tile: no grid, no pipeline prologue/epilogue.
        b_pad = b128
        p_slab = _joint_slab(pred, b_pad)
        g_slab = _joint_slab(gt, b_pad)
        out = pl.pallas_call(
            _fused_joint_losses_kernel,
            out_shape=jax.ShapeDtypeStruct((3, b_pad), jnp.float32),
            compiler_params=pltpu.CompilerParams(
                vmem_limit_bytes=_vmem_limit_bytes(rows, b_pad, pred.dtype, False)),
        )(p_slab, g_slab)
    else:
        # Large batch: 1-D grid over lane tiles, auto double-buffered pipeline.
        b_pad = _round_up(B, tb)
        grid_b = b_pad // tb
        p_slab = _joint_slab(pred, b_pad)
        g_slab = _joint_slab(gt, b_pad)
        in_spec = pl.BlockSpec((rows, tb), lambda i: (0, i))
        out = pl.pallas_call(
            _fused_joint_losses_kernel,
            out_shape=jax.ShapeDtypeStruct((3, b_pad), jnp.float32),
            grid=(grid_b,),
            in_specs=[in_spec, in_spec],
            out_specs=pl.BlockSpec((3, tb), lambda i: (0, i)),
            compiler_params=pltpu.CompilerParams(
                dimension_semantics=("parallel",),   # only reached for B > block_b
                vmem_limit_bytes=_vmem_limit_bytes(rows, tb, pred.dtype, True)),
        )(p_slab, g_slab)

    return out[0, :B], out[1, :B], out[2, :B]


# ---------------------------------------------------------------------------
# Module-level forward (InterShapeLoss, default config) built on the kernel.
# ---------------------------------------------------------------------------
def inter_shape_loss(result, gt, meta, *, l_offset=1.0, l_consistency=0.1,
                     l_joint=100.0, l_length=100.0, l_shape=1.0, l_reg=0.1,
                     l_g_rot=100.0, block_b=16384):
    # TODO(synk): the `root is not None` ('center') branch and the absolute=True
    # pose-key selection are host-side config control flow and are not ported.
    loss = {}

    def masked_mean(per_sample, mask):
        m = mask.astype(jnp.float32)
        return jnp.sum(per_sample * m) / jnp.sum(m)   # NaN on empty mask, like torch .mean()

    for side in ('l', 'r'):
        if side + '_mano_joints' in gt and side in result:
            m = meta[side + '_joints'] == 1
            l1_j, bone, grot = fused_joint_losses(
                result[side]['joints3d'], gt[side + '_mano_joints'], block_b=block_b)
            # Reference checks the never-set key 'l1_joints', so 'l2_joints' is
            # overwritten (not accumulated) for the second side; kept faithfully.
            loss['l2_joints'] = l_joint * masked_mean(l1_j, m)
            loss['global_rot'] = loss.get('global_rot', 0.0) + l_g_rot * masked_mean(grot, m)
            loss['bone_len'] = loss.get('bone_len', 0.0) + l_length * masked_mean(bone, m)
        if side + '_shape' in gt and side in result:
            m = meta[side + '_mano'] == 1
            shape_mse = jnp.sum((result[side]['shape'] - gt[side + '_shape']) ** 2, axis=-1)
            loss['shape'] = loss.get('shape', 0.0) + l_shape * masked_mean(shape_mse, m)
            mano_reg = (0.1 * jnp.sum(result[side]['shape'] ** 2, axis=-1)
                        + jnp.sum(result[side]['pose'] ** 2, axis=-1))
            loss['MANO_reg'] = loss.get('MANO_reg', 0.0) + l_reg * masked_mean(mano_reg, m)

    if 'l' in result and 'r' in result:
        loss['two_shape'] = l_consistency * jnp.mean(
            jnp.sum((result['l']['shape'] - result['r']['shape']) ** 2, axis=-1))
        off_out = result['r']['T_joints3d'] - result['l']['T_joints3d']
        off_gt = gt['r_joints'] - gt['l_joints']
        loss['offset'] = l_offset * jnp.mean(jnp.sum((off_out - off_gt) ** 2, axis=-1))
    return loss


# ---------------------------------------------------------------------------
# Pure-jnp reference for the kernel outputs.
# ---------------------------------------------------------------------------
def _reference_joint_losses(pred, gt):
    p = pred.astype(jnp.float32)
    g = gt.astype(jnp.float32)
    l1 = jnp.sum(jnp.abs(p - g), axis=(-1, -2))
    bp = jnp.stack([jnp.sqrt(jnp.sum((p[:, a] - p[:, b]) ** 2, -1)) for a, b in SKELETON], -1)
    bg = jnp.stack([jnp.sqrt(jnp.sum((g[:, a] - g[:, b]) ** 2, -1)) for a, b in SKELETON], -1)
    bone = jnp.sum((bp - bg) ** 2, -1)
    sp = p[:, NECK_IDX] - p[:, ROOT_IDX]
    sg = g[:, NECK_IDX] - g[:, ROOT_IDX]
    grot = 1.0 - jnp.sum(sp * sg, -1) / (jnp.sqrt(jnp.sum(sp * sp, -1)) *
                                         jnp.sqrt(jnp.sum(sg * sg, -1)))
    return l1, bone, grot


if __name__ == "__main__":
    key = jax.random.PRNGKey(0)
    ks = jax.random.split(key, 10)
    B, J = 2, 21

    # --- 1) kernel vs. reference, single-tile (no-grid) path -----------------
    pred = jax.random.normal(ks[0], (B, J, D), jnp.float32)
    gt_j = jax.random.normal(ks[1], (B, J, D), jnp.float32)
    l1, bone, grot = fused_joint_losses(pred, gt_j)
    jax.block_until_ready(grot)
    r_l1, r_bone, r_grot = _reference_joint_losses(pred, gt_j)
    assert l1.shape == bone.shape == grot.shape == (B,)
    assert jnp.allclose(l1, r_l1, atol=1e-4, rtol=1e-4)
    assert jnp.allclose(bone, r_bone, atol=1e-4, rtol=1e-4)
    assert jnp.allclose(grot, r_grot, atol=1e-4, rtol=1e-4)

    # --- 2) gridded path (forced small tile, 3 grid steps, padded batch) -----
    B2 = 300
    pred2 = jax.random.normal(ks[2], (B2, J, D), jnp.float32)
    gt_j2 = jax.random.normal(ks[3], (B2, J, D), jnp.float32)
    l1b, boneb, grotb = fused_joint_losses(pred2, gt_j2, block_b=128)
    jax.block_until_ready(grotb)
    r2 = _reference_joint_losses(pred2, gt_j2)
    assert jnp.allclose(l1b, r2[0], atol=1e-4, rtol=1e-4)
    assert jnp.allclose(boneb, r2[1], atol=1e-4, rtol=1e-4)
    assert jnp.allclose(grotb, r2[2], atol=1e-4, rtol=1e-4)

    # --- 3) module-level forward on small dicts -------------------------------
    result = {
        s: {'joints3d': jax.random.normal(ks[4 + i], (B, J, D), jnp.float32),
            'T_joints3d': jax.random.normal(ks[6 + i], (B, J, D), jnp.float32),
            'shape': 0.1 * jax.random.normal(ks[8], (B, 10), jnp.float32) + 0.01 * i,
            'pose': 0.1 * jax.random.normal(ks[9], (B, 48), jnp.float32)}
        for i, s in enumerate(('l', 'r'))
    }
    gt = {'l_mano_joints': gt_j, 'r_mano_joints': gt_j + 0.05,
          'l_joints': gt_j, 'r_joints': gt_j + 0.05,
          'l_shape': jnp.zeros((B, 10), jnp.float32),
          'r_shape': jnp.zeros((B, 10), jnp.float32)}
    meta = {'l_joints': jnp.array([1, 1], jnp.int32),
            'r_joints': jnp.array([1, 0], jnp.int32),
            'l_mano': jnp.array([1, 1], jnp.int32),
            'r_mano': jnp.array([0, 1], jnp.int32)}
    loss = inter_shape_loss(result, gt, meta)
    jax.block_until_ready(loss['global_rot'])
    expected_keys = {'l2_joints', 'global_rot', 'bone_len', 'shape', 'MANO_reg',
                     'two_shape', 'offset'}
    assert set(loss.keys()) == expected_keys
    assert all(bool(jnp.isfinite(v)) for v in loss.values())

    print("KERNEL_OK")
</pallas_src>

<mosaic_0001>
module attributes {stable_mosaic.version = 11 : i64} {
  func.func @_fused_joint_losses_kernel(%arg0: memref<63x128xf32, #tpu.memory_space<vmem>>, %arg1: memref<63x128xf32, #tpu.memory_space<vmem>>, %arg2: memref<3x128xf32, #tpu.memory_space<vmem>>) attributes {dimension_semantics = [], scalar_prefetch = 0 : i64, scratch_operands = 0 : i64, tpu.core_type = #tpu.core_type<tc>} {
    %c0 = arith.constant 0 : index
    %c0_0 = arith.constant 0 : index
    %0 = vector.load %arg0[%c0, %c0_0] : memref<63x128xf32, #tpu.memory_space<vmem>>, vector<63x128xf32>
    %c0_1 = arith.constant 0 : index
    %c0_2 = arith.constant 0 : index
    %1 = vector.load %arg1[%c0_1, %c0_2] : memref<63x128xf32, #tpu.memory_space<vmem>>, vector<63x128xf32>
    %2 = arith.subf %0, %1 : vector<63x128xf32>
    %3 = math.absf %2 : vector<63x128xf32>
    %cst = arith.constant dense<0.000000e+00> : vector<128xf32>
    %4 = vector.multi_reduction <add>, %3, %cst [0] : vector<63x128xf32> to vector<128xf32>
    %5 = vector.shape_cast %4 : vector<128xf32> to vector<1x128xf32>
    %cst_3 = arith.constant 0.000000e+00 : f32
    %6 = vector.broadcast %cst_3 : f32 to vector<1x128xf32>
    %7 = vector.extract_strided_slice %0 {offsets = [0, 0], sizes = [3, 128], strides = [1, 1]} : vector<63x128xf32> to vector<3x128xf32>
    %8 = vector.extract_strided_slice %0 {offsets = [3, 0], sizes = [3, 128], strides = [1, 1]} : vector<63x128xf32> to vector<3x128xf32>
    %9 = arith.subf %7, %8 : vector<3x128xf32>
    %10 = vector.extract_strided_slice %1 {offsets = [0, 0], sizes = [3, 128], strides = [1, 1]} : vector<63x128xf32> to vector<3x128xf32>
    %11 = vector.extract_strided_slice %1 {offsets = [3, 0], sizes = [3, 128], strides = [1, 1]} : vector<63x128xf32> to vector<3x128xf32>
    %12 = arith.subf %10, %11 : vector<3x128xf32>
    %13 = vector.extract_strided_slice %9 {offsets = [0, 0], sizes = [1, 128], strides = [1, 1]} : vector<3x128xf32> to vector<1x128xf32>
    %14 = vector.extract_strided_slice %9 {offsets = [0, 0], sizes = [1, 128], strides = [1, 1]} : vector<3x128xf32> to vector<1x128xf32>
    %15 = arith.mulf %13, %14 : vector<1x128xf32>
    %16 = vector.extract_strided_slice %9 {offsets = [1, 0], sizes = [1, 128], strides = [1, 1]} : vector<3x128xf32> to vector<1x128xf32>
    %17 = vector.extract_strided_slice %9 {offsets = [1, 0], sizes = [1, 128], strides = [1, 1]} : vector<3x128xf32> to vector<1x128xf32>
    %18 = arith.mulf %16, %17 : vector<1x128xf32>
    %19 = arith.addf %15, %18 : vector<1x128xf32>
    %20 = vector.extract_strided_slice %9 {offsets = [2, 0], sizes = [1, 128], strides = [1, 1]} : vector<3x128xf32> to vector<1x128xf32>
    %21 = vector.extract_strided_slice %9 {offsets = [2, 0], sizes = [1, 128], strides = [1, 1]} : vector<3x128xf32> to vector<1x128xf32>
    %22 = arith.mulf %20, %21 : vector<1x128xf32>
    %23 = arith.addf %19, %22 : vector<1x128xf32>
    %24 = math.sqrt %23 : vector<1x128xf32>
    %25 = vector.extract_strided_slice %12 {offsets = [0, 0], sizes = [1, 128], strides = [1, 1]} : vector<3x128xf32> to vector<1x128xf32>
    %26 = vector.extract_strided_slice %12 {offsets = [0, 0], sizes = [1, 128], strides = [1, 1]} : vector<3x128xf32> to vector<1x128xf32>
    %27 = arith.mulf %25, %26 : vector<1x128xf32>
    %28 = vector.extract_strided_slice %12 {offsets = [1, 0], sizes = [1, 128], strides = [1, 1]} : vector<3x128xf32> to vector<1x128xf32>
    %29 = vector.extract_strided_slice %12 {offsets = [1, 0], sizes = [1, 128], strides = [1, 1]} : vector<3x128xf32> to vector<1x128xf32>
    %30 = arith.mulf %28, %29 : vector<1x128xf32>
    %31 = arith.addf %27, %30 : vector<1x128xf32>
    %32 = vector.extract_strided_slice %12 {offsets = [2, 0], sizes = [1, 128], strides = [1, 1]} : vector<3x128xf32> to vector<1x128xf32>
    %33 = vector.extract_strided_slice %12 {offsets = [2, 0], sizes = [1, 128], strides = [1, 1]} : vector<3x128xf32> to vector<1x128xf32>
    %34 = arith.mulf %32, %33 : vector<1x128xf32>
    %35 = arith.addf %31, %34 : vector<1x128xf32>
    %36 = math.sqrt %35 : vector<1x128xf32>
    %37 = arith.subf %24, %36 : vector<1x128xf32>
    %38 = arith.mulf %37, %37 : vector<1x128xf32>
    %39 = arith.addf %6, %38 : vector<1x128xf32>
    %40 = vector.extract_strided_slice %0 {offsets = [3, 0], sizes = [3, 128], strides = [1, 1]} : vector<63x128xf32> to vector<3x128xf32>
    %41 = vector.extract_strided_slice %0 {offsets = [6, 0], sizes = [3, 128], strides = [1, 1]} : vector<63x128xf32> to vector<3x128xf32>
    %42 = arith.subf %40, %41 : vector<3x128xf32>
    %43 = vector.extract_strided_slice %1 {offsets = [3, 0], sizes = [3, 128], strides = [1, 1]} : vector<63x128xf32> to vector<3x128xf32>
    %44 = vector.extract_strided_slice %1 {offsets = [6, 0], sizes = [3, 128], strides = [1, 1]} : vector<63x128xf32> to vector<3x128xf32>
    %45 = arith.subf %43, %44 : vector<3x128xf32>
    %46 = vector.extract_strided_slice %42 {offsets = [0, 0], sizes = [1, 128], strides = [1, 1]} : vector<3x128xf32> to vector<1x128xf32>
    %47 = vector.extract_strided_slice %42 {offsets = [0, 0], sizes = [1, 128], strides = [1, 1]} : vector<3x128xf32> to vector<1x128xf32>
    %48 = arith.mulf %46, %47 : vector<1x128xf32>
    %49 = vector.extract_strided_slice %42 {offsets = [1, 0], sizes = [1, 128], strides = [1, 1]} : vector<3x128xf32> to vector<1x128xf32>
    %50 = vector.extract_strided_slice %42 {offsets = [1, 0], sizes = [1, 128], strides = [1, 1]} : vector<3x128xf32> to vector<1x128xf32>
    %51 = arith.mulf %49, %50 : vector<1x128xf32>
    %52 = arith.addf %48, %51 : vector<1x128xf32>
    %53 = vector.extract_strided_slice %42 {offsets = [2, 0], sizes = [1, 128], strides = [1, 1]} : vector<3x128xf32> to vector<1x128xf32>
    %54 = vector.extract_strided_slice %42 {offsets = [2, 0], sizes = [1, 128], strides = [1, 1]} : vector<3x128xf32> to vector<1x128xf32>
    %55 = arith.mulf %53, %54 : vector<1x128xf32>
    %56 = arith.addf %52, %55 : vector<1x128xf32>
    %57 = math.sqrt %56 : vector<1x128xf32>
    %58 = vector.extract_strided_slice %45 {offsets = [0, 0], sizes = [1, 128], strides = [1, 1]} : vector<3x128xf32> to vector<1x128xf32>
    %59 = vector.extract_strided_slice %45 {offsets = [0, 0], sizes = [1, 128], strides = [1, 1]} : vector<3x128xf32> to vector<1x128xf32>
    %60 = arith.mulf %58, %59 : vector<1x128xf32>
    %61 = vector.extract_strided_slice %45 {offsets = [1, 0], sizes = [1, 128], strides = [1, 1]} : vector<3x128xf32> to vector<1x128xf32>
    %62 = vector.extract_strided_slice %45 {offsets = [1, 0], sizes = [1, 128], strides = [1, 1]} : vector<3x128xf32> to vector<1x128xf32>
    %63 = arith.mulf %61, %62 : vector<1x128xf32>
    %64 = arith.addf %60, %63 : vector<1x128xf32>
    %65 = vector.extract_strided_slice %45 {offsets = [2, 0], sizes = [1, 128], strides = [1, 1]} : vector<3x128xf32> to vector<1x128xf32>
    %66 = vector.extract_strided_slice %45 {offsets = [2, 0], sizes = [1, 128], strides = [1, 1]} : vector<3x128xf32> to vector<1x128xf32>
    %67 = arith.mulf %65, %66 : vector<1x128xf32>
    %68 = arith.addf %64, %67 : vector<1x128xf32>
    %69 = math.sqrt %68 : vector<1x128xf32>
    %70 = arith.subf %57, %69 : vector<1x128xf32>
    %71 = arith.mulf %70, %70 : vector<1x128xf32>
    %72 = arith.addf %39, %71 : vector<1x128xf32>
    %73 = vector.extract_strided_slice %0 {offsets = [6, 0], sizes = [3, 128], strides = [1, 1]} : vector<63x128xf32> to vector<3x128xf32>
    %74 = vector.extract_strided_slice %0 {offsets = [9, 0], sizes = [3, 128], strides = [1, 1]} : vector<63x128xf32> to vector<3x128xf32>
    %75 = arith.subf %73, %74 : vector<3x128xf32>
    %76 = vector.extract_strided_slice %1 {offsets = [6, 0], sizes = [3, 128], strides = [1, 1]} : vector<63x128xf32> to vector<3x128xf32>
    %77 = vector.extract_strided_slice %1 {offsets = [9, 0], sizes = [3, 128], strides = [1, 1]} : vector<63x128xf32> to vector<3x128xf32>
    %78 = arith.subf %76, %77 : vector<3x128xf32>
    %79 = vector.extract_strided_slice %75 {offsets = [0, 0], sizes = [1, 128], strides = [1, 1]} : vector<3x128xf32> to vector<1x128xf32>
    %80 = vector.extract_strided_slice %75 {offsets = [0, 0], sizes = [1, 128], strides = [1, 1]} : vector<3x128xf32> to vector<1x128xf32>
    %81 = arith.mulf %79, %80 : vector<1x128xf32>
    %82 = vector.extract_strided_slice %75 {offsets = [1, 0], sizes = [1, 128], strides = [1, 1]} : vector<3x128xf32> to vector<1x128xf32>
    %83 = vector.extract_strided_slice %75 {offsets = [1, 0], sizes = [1, 128], strides = [1, 1]} : vector<3x128xf32> to vector<1x128xf32>
    %84 = arith.mulf %82, %83 : vector<1x128xf32>
    %85 = arith.addf %81, %84 : vector<1x128xf32>
    %86 = vector.extract_strided_slice %75 {offsets = [2, 0], sizes = [1, 128], strides = [1, 1]} : vector<3x128xf32> to vector<1x128xf32>
    %87 = vector.extract_strided_slice %75 {offsets = [2, 0], sizes = [1, 128], strides = [1, 1]} : vector<3x128xf32> to vector<1x128xf32>
    %88 = arith.mulf %86, %87 : vector<1x128xf32>
    %89 = arith.addf %85, %88 : vector<1x128xf32>
    %90 = math.sqrt %89 : vector<1x128xf32>
    %91 = vector.extract_strided_slice %78 {offsets = [0, 0], sizes = [1, 128], strides = [1, 1]} : vector<3x128xf32> to vector<1x128xf32>
    %92 = vector.extract_strided_slice %78 {offsets = [0, 0], sizes = [1, 128], strides = [1, 1]} : vector<3x128xf32> to vector<1x128xf32>
    %93 = arith.mulf %91, %92 : vector<1x128xf32>
    %94 = vector.extract_strided_slice %78 {offsets = [1, 0], sizes = [1, 128], strides = [1, 1]} : vector<3x128xf32> to vector<1x128xf32>
    %95 = vector.extract_strided_slice %78 {offsets = [1, 0], sizes = [1, 128], strides = [1, 1]} : vector<3x128xf32> to vector<1x128xf32>
    %96 = arith.mulf %94, %95 : vector<1x128xf32>
    %97 = arith.addf %93, %96 : vector<1x128xf32>
    %98 = vector.extract_strided_slice %78 {offsets = [2, 0], sizes = [1, 128], strides = [1, 1]} : vector<3x128xf32> to vector<1x128xf32>
    %99 = vector.extract_strided_slice %78 {offsets = [2, 0], sizes = [1, 128], strides = [1, 1]} : vector<3x128xf32> to vector<1x128xf32>
    %100 = arith.mulf %98, %99 : vector<1x128xf32>
    %101 = arith.addf %97, %100 : vector<1x128xf32>
    %102 = math.sqrt %101 : vector<1x128xf32>
    %103 = arith.subf %90, %102 : vector<1x128xf32>
    %104 = arith.mulf %103, %103 : vector<1x128xf32>
    %105 = arith.addf %72, %104 : vector<1x128xf32>
    %106 = vector.extract_strided_slice %0 {offsets = [9, 0], sizes = [3, 128], strides = [1, 1]} : vector<63x128xf32> to vector<3x128xf32>
    %107 = vector.extract_strided_slice %0 {offsets = [12, 0], sizes = [3, 128], strides = [1, 1]} : vector<63x128xf32> to vector<3x128xf32>
    %108 = arith.subf %106, %107 : vector<3x128xf32>
    %109 = vector.extract_strided_slice %1 {offsets = [9, 0], sizes = [3, 128], strides = [1, 1]} : vector<63x128xf32> to vector<3x128xf32>
    %110 = vector.extract_strided_slice %1 {offsets = [12, 0], sizes = [3, 128], strides = [1, 1]} : vector<63x128xf32> to vector<3x128xf32>
    %111 = arith.subf %109, %110 : vector<3x128xf32>
    %112 = vector.extract_strided_slice %108 {offsets = [0, 0], sizes = [1, 128], strides = [1, 1]} : vector<3x128xf32> to vector<1x128xf32>
    %113 = vector.extract_strided_slice %108 {offsets = [0, 0], sizes = [1, 128], strides = [1, 1]} : vector<3x128xf32> to vector<1x128xf32>
    %114 = arith.mulf %112, %113 : vector<1x128xf32>
    %115 = vector.extract_strided_slice %108 {offsets = [1, 0], sizes = [1, 128], strides = [1, 1]} : vector<3x128xf32> to vector<1x128xf32>
    %116 = vector.extract_strided_slice %108 {offsets = [1, 0], sizes = [1, 128], strides = [1, 1]} : vector<3x128xf32> to vector<1x128xf32>
    %117 = arith.mulf %115, %116 : vector<1x128xf32>
    %118 = arith.addf %114, %117 : vector<1x128xf32>
    %119 = vector.extract_strided_slice %108 {offsets = [2, 0], sizes = [1, 128], strides = [1, 1]} : vector<3x128xf32> to vector<1x128xf32>
    %120 = vector.extract_strided_slice %108 {offsets = [2, 0], sizes = [1, 128], strides = [1, 1]} : vector<3x128xf32> to vector<1x128xf32>
    %121 = arith.mulf %119, %120 : vector<1x128xf32>
    %122 = arith.addf %118, %121 : vector<1x128xf32>
    %123 = math.sqrt %122 : vector<1x128xf32>
    %124 = vector.extract_strided_slice %111 {offsets = [0, 0], sizes = [1, 128], strides = [1, 1]} : vector<3x128xf32> to vector<1x128xf32>
    %125 = vector.extract_strided_slice %111 {offsets = [0, 0], sizes = [1, 128], strides = [1, 1]} : vector<3x128xf32> to vector<1x128xf32>
    %126 = arith.mulf %124, %125 : vector<1x128xf32>
    %127 = vector.extract_strided_slice %111 {offsets = [1, 0], sizes = [1, 128], strides = [1, 1]} : vector<3x128xf32> to vector<1x128xf32>
    %128 = vector.extract_strided_slice %111 {offsets = [1, 0], sizes = [1, 128], strides = [1, 1]} : vector<3x128xf32> to vector<1x128xf32>
    %129 = arith.mulf %127, %128 : vector<1x128xf32>
    %130 = arith.addf %126, %129 : vector<1x128xf32>
    %131 = vector.extract_strided_slice %111 {offsets = [2, 0], sizes = [1, 128], strides = [1, 1]} : vector<3x128xf32> to vector<1x128xf32>
    %132 = vector.extract_strided_slice %111 {offsets = [2, 0], sizes = [1, 128], strides = [1, 1]} : vector<3x128xf32> to vector<1x128xf32>
    %133 = arith.mulf %131, %132 : vector<1x128xf32>
    %134 = arith.addf %130, %133 : vector<1x128xf32>
    %135 = math.sqrt %134 : vector<1x128xf32>
    %136 = arith.subf %123, %135 : vector<1x128xf32>
    %137 = arith.mulf %136, %136 : vector<1x128xf32>
    %138 = arith.addf %105, %137 : vector<1x128xf32>
    %139 = vector.extract_strided_slice %0 {offsets = [0, 0], sizes = [3, 128], strides = [1, 1]} : vector<63x128xf32> to vector<3x128xf32>
    %140 = vector.extract_strided_slice %0 {offsets = [15, 0], sizes = [3, 128], strides = [1, 1]} : vector<63x128xf32> to vector<3x128xf32>
    %141 = arith.subf %139, %140 : vector<3x128xf32>
    %142 = vector.extract_strided_slice %1 {offsets = [0, 0], sizes = [3, 128], strides = [1, 1]} : vector<63x128xf32> to vector<3x128xf32>
    %143 = vector.extract_strided_slice %1 {offsets = [15, 0], sizes = [3, 128], strides = [1, 1]} : vector<63x128xf32> to vector<3x128xf32>
    %144 = arith.subf %142, %143 : vector<3x128xf32>
    %145 = vector.extract_strided_slice %141 {offsets = [0, 0], sizes = [1, 128], strides = [1, 1]} : vector<3x128xf32> to vector<1x128xf32>
    %146 = vector.extract_strided_slice %141 {offsets = [0, 0], sizes = [1, 128], strides = [1, 1]} : vector<3x128xf32> to vector<1x128xf32>
    %147 = arith.mulf %145, %146 : vector<1x128xf32>
    %148 = vector.extract_strided_slice %141 {offsets = [1, 0], sizes = [1, 128], strides = [1, 1]} : vector<3x128xf32> to vector<1x128xf32>
    %149 = vector.extract_strided_slice %141 {offsets = [1, 0], sizes = [1, 128], strides = [1, 1]} : vector<3x128xf32> to vector<1x128xf32>
    %150 = arith.mulf %148, %149 : vector<1x128xf32>
    %151 = arith.addf %147, %150 : vector<1x128xf32>
    %152 = vector.extract_strided_slice %141 {offsets = [2, 0], sizes = [1, 128], strides = [1, 1]} : vector<3x128xf32> to vector<1x128xf32>
    %153 = vector.extract_strided_slice %141 {offsets = [2, 0], sizes = [1, 128], strides = [1, 1]} : vector<3x128xf32> to vector<1x128xf32>
    %154 = arith.mulf %152, %153 : vector<1x128xf32>
    %155 = arith.addf %151, %154 : vector<1x128xf32>
    %156 = math.sqrt %155 : vector<1x128xf32>
    %157 = vector.extract_strided_slice %144 {offsets = [0, 0], sizes = [1, 128], strides = [1, 1]} : vector<3x128xf32> to vector<1x128xf32>
    %158 = vector.extract_strided_slice %144 {offsets = [0, 0], sizes = [1, 128], strides = [1, 1]} : vector<3x128xf32> to vector<1x128xf32>
    %159 = arith.mulf %157, %158 : vector<1x128xf32>
    %160 = vector.extract_strided_slice %144 {offsets = [1, 0], sizes = [1, 128], strides = [1, 1]} : vector<3x128xf32> to vector<1x128xf32>
    %161 = vector.extract_strided_slice %144 {offsets = [1, 0], sizes = [1, 128], strides = [1, 1]} : vector<3x128xf32> to vector<1x128xf32>
    %162 = arith.mulf %160, %161 : vector<1x128xf32>
    %163 = arith.addf %159, %162 : vector<1x128xf32>
    %164 = vector.extract_strided_slice %144 {offsets = [2, 0], sizes = [1, 128], strides = [1, 1]} : vector<3x128xf32> to vector<1x128xf32>
    %165 = vector.extract_strided_slice %144 {offsets = [2, 0], sizes = [1, 128], strides = [1, 1]} : vector<3x128xf32> to vector<1x128xf32>
    %166 = arith.mulf %164, %165 : vector<1x128xf32>
    %167 = arith.addf %163, %166 : vector<1x128xf32>
    %168 = math.sqrt %167 : vector<1x128xf32>
    %169 = arith.subf %156, %168 : vector<1x128xf32>
    %170 = arith.mulf %169, %169 : vector<1x128xf32>
    %171 = arith.addf %138, %170 : vector<1x128xf32>
    %172 = vector.extract_strided_slice %0 {offsets = [15, 0], sizes = [3, 128], strides = [1, 1]} : vector<63x128xf32> to vector<3x128xf32>
    %173 = vector.extract_strided_slice %0 {offsets = [18, 0], sizes = [3, 128], strides = [1, 1]} : vector<63x128xf32> to vector<3x128xf32>
    %174 = arith.subf %172, %173 : vector<3x128xf32>
    %175 = vector.extract_strided_slice %1 {offsets = [15, 0], sizes = [3, 128], strides = [1, 1]} : vector<63x128xf32> to vector<3x128xf32>
    %176 = vector.extract_strided_slice %1 {offsets = [18, 0], sizes = [3, 128], strides = [1, 1]} : vector<63x128xf32> to vector<3x128xf32>
    %177 = arith.subf %175, %176 : vector<3x128xf32>
    %178 = vector.extract_strided_slice %174 {offsets = [0, 0], sizes = [1, 128], strides = [1, 1]} : vector<3x128xf32> to vector<1x128xf32>
    %179 = vector.extract_strided_slice %174 {offsets = [0, 0], sizes = [1, 128], strides = [1, 1]} : vector<3x128xf32> to vector<1x128xf32>
    %180 = arith.mulf %178, %179 : vector<1x128xf32>
    %181 = vector.extract_strided_slice %174 {offsets = [1, 0], sizes = [1, 128], strides = [1, 1]} : vector<3x128xf32> to vector<1x128xf32>
    %182 = vector.extract_strided_slice %174 {offsets = [1, 0], sizes = [1, 128], strides = [1, 1]} : vector<3x128xf32> to vector<1x128xf32>
    %183 = arith.mulf %181, %182 : vector<1x128xf32>
    %184 = arith.addf %180, %183 : vector<1x128xf32>
    %185 = vector.extract_strided_slice %174 {offsets = [2, 0], sizes = [1, 128], strides = [1, 1]} : vector<3x128xf32> to vector<1x128xf32>
    %186 = vector.extract_strided_slice %174 {offsets = [2, 0], sizes = [1, 128], strides = [1, 1]} : vector<3x128xf32> to vector<1x128xf32>
    %187 = arith.mulf %185, %186 : vector<1x128xf32>
    %188 = arith.addf %184, %187 : vector<1x128xf32>
    %189 = math.sqrt %188 : vector<1x128xf32>
    %190 = vector.extract_strided_slice %177 {offsets = [0, 0], sizes = [1, 128], strides = [1, 1]} : vector<3x128xf32> to vector<1x128xf32>
    %191 = vector.extract_strided_slice %177 {offsets = [0, 0], sizes = [1, 128], strides = [1, 1]} : vector<3x128xf32> to vector<1x128xf32>
    %192 = arith.mulf %190, %191 : vector<1x128xf32>
    %193 = vector.extract_strided_slice %177 {offsets = [1, 0], sizes = [1, 128], strides = [1, 1]} : vector<3x128xf32> to vector<1x128xf32>
    %194 = vector.extract_strided_slice %177 {offsets = [1, 0], sizes = [1, 128], strides = [1, 1]} : vector<3x128xf32> to vector<1x128xf32>
    %195 = arith.mulf %193, %194 : vector<1x128xf32>
    %196 = arith.addf %192, %195 : vector<1x128xf32>
    %197 = vector.extract_strided_slice %177 {offsets = [2, 0], sizes = [1, 128], strides = [1, 1]} : vector<3x128xf32> to vector<1x128xf32>
    %198 = vector.extract_strided_slice %177 {offsets = [2, 0], sizes = [1, 128], strides = [1, 1]} : vector<3x128xf32> to vector<1x128xf32>
    %199 = arith.mulf %197, %198 : vector<1x128xf32>
    %200 = arith.addf %196, %199 : vector<1x128xf32>
    %201 = math.sqrt %200 : vector<1x128xf32>
    %202 = arith.subf %189, %201 : vector<1x128xf32>
    %203 = arith.mulf %202, %202 : vector<1x128xf32>
    %204 = arith.addf %171, %203 : vector<1x128xf32>
    %205 = vector.extract_strided_slice %0 {offsets = [18, 0], sizes = [3, 128], strides = [1, 1]} : vector<63x128xf32> to vector<3x128xf32>
    %206 = vector.extract_strided_slice %0 {offsets = [21, 0], sizes = [3, 128], strides = [1, 1]} : vector<63x128xf32> to vector<3x128xf32>
    %207 = arith.subf %205, %206 : vector<3x128xf32>
    %208 = vector.extract_strided_slice %1 {offsets = [18, 0], sizes = [3, 128], strides = [1, 1]} : vector<63x128xf32> to vector<3x128xf32>
    %209 = vector.extract_strided_slice %1 {offsets = [21, 0], sizes = [3, 128], strides = [1, 1]} : vector<63x128xf32> to vector<3x128xf32>
    %210 = arith.subf %208, %209 : vector<3x128xf32>
    %211 = vector.extract_strided_slice %207 {offsets = [0, 0], sizes = [1, 128], strides = [1, 1]} : vector<3x128xf32> to vector<1x128xf32>
    %212 = vector.extract_strided_slice %207 {offsets = [0, 0], sizes = [1, 128], strides = [1, 1]} : vector<3x128xf32> to vector<1x128xf32>
    %213 = arith.mulf %211, %212 : vector<1x128xf32>
    %214 = vector.extract_strided_slice %207 {offsets = [1, 0], sizes = [1, 128], strides = [1, 1]} : vector<3x128xf32> to vector<1x128xf32>
    %215 = vector.extract_strided_slice %207 {offsets = [1, 0], sizes = [1, 128], strides = [1, 1]} : vector<3x128xf32> to vector<1x128xf32>
    %216 = arith.mulf %214, %215 : vector<1x128xf32>
    %217 = arith.addf %213, %216 : vector<1x128xf32>
    %218 = vector.extract_strided_slice %207 {offsets = [2, 0], sizes = [1, 128], strides = [1, 1]} : vector<3x128xf32> to vector<1x128xf32>
    %219 = vector.extract_strided_slice %207 {offsets = [2, 0], sizes = [1, 128], strides = [1, 1]} : vector<3x128xf32> to vector<1x128xf32>
    %220 = arith.mulf %218, %219 : vector<1x128xf32>
    %221 = arith.addf %217, %220 : vector<1x128xf32>
    %222 = math.sqrt %221 : vector<1x128xf32>
    %223 = vector.extract_strided_slice %210 {offsets = [0, 0], sizes = [1, 128], strides = [1, 1]} : vector<3x128xf32> to vector<1x128xf32>
    %224 = vector.extract_strided_slice %210 {offsets = [0, 0], sizes = [1, 128], strides = [1, 1]} : vector<3x128xf32> to vector<1x128xf32>
    %225 = arith.mulf %223, %224 : vector<1x128xf32>
    %226 = vector.extract_strided_slice %210 {offsets = [1, 0], sizes = [1, 128], strides = [1, 1]} : vector<3x128xf32> to vector<1x128xf32>
    %227 = vector.extract_strided_slice %210 {offsets = [1, 0], sizes = [1, 128], strides = [1, 1]} : vector<3x128xf32> to vector<1x128xf32>
    %228 = arith.mulf %226, %227 : vector<1x128xf32>
    %229 = arith.addf %225, %228 : vector<1x128xf32>
    %230 = vector.extract_strided_slice %210 {offsets = [2, 0], sizes = [1, 128], strides = [1, 1]} : vector<3x128xf32> to vector<1x128xf32>
    %231 = vector.extract_strided_slice %210 {offsets = [2, 0], sizes = [1, 128], strides = [1, 1]} : vector<3x128xf32> to vector<1x128xf32>
    %232 = arith.mulf %230, %231 : vector<1x128xf32>
    %233 = arith.addf %229, %232 : vector<1x128xf32>
    %234 = math.sqrt %233 : vector<1x128xf32>
    %235 = arith.subf %222, %234 : vector<1x128xf32>
    %236 = arith.mulf %235, %235 : vector<1x128xf32>
    %237 = arith.addf %204, %236 : vector<1x128xf32>
    %238 = vector.extract_strided_slice %0 {offsets = [21, 0], sizes = [3, 128], strides = [1, 1]} : vector<63x128xf32> to vector<3x128xf32>
    %239 = vector.extract_strided_slice %0 {offsets = [24, 0], sizes = [3, 128], strides = [1, 1]} : vector<63x128xf32> to vector<3x128xf32>
    %240 = arith.subf %238, %239 : vector<3x128xf32>
    %241 = vector.extract_strided_slice %1 {offsets = [21, 0], sizes = [3, 128], strides = [1, 1]} : vector<63x128xf32> to vector<3x128xf32>
    %242 = vector.extract_strided_slice %1 {offsets = [24, 0], sizes = [3, 128], strides = [1, 1]} : vector<63x128xf32> to vector<3x128xf32>
    %243 = arith.subf %241, %242 : vector<3x128xf32>
    %244 = vector.extract_strided_slice %240 {offsets = [0, 0], sizes = [1, 128], strides = [1, 1]} : vector<3x128xf32> to vector<1x128xf32>
    %245 = vector.extract_strided_slice %240 {offsets = [0, 0], sizes = [1, 128], strides = [1, 1]} : vector<3x128xf32> to vector<1x128xf32>
    %246 = arith.mulf %244, %245 : vector<1x128xf32>
    %247 = vector.extract_strided_slice %240 {offsets = [1, 0], sizes = [1, 128], strides = [1, 1]} : vector<3x128xf32> to vector<1x128xf32>
    %248 = vector.extract_strided_slice %240 {offsets = [1, 0], sizes = [1, 128], strides = [1, 1]} : vector<3x128xf32> to vector<1x128xf32>
    %249 = arith.mulf %247, %248 : vector<1x128xf32>
    %250 = arith.addf %246, %249 : vector<1x128xf32>
    %251 = vector.extract_strided_slice %240 {offsets = [2, 0], sizes = [1, 128], strides = [1, 1]} : vector<3x128xf32> to vector<1x128xf32>
    %252 = vector.extract_strided_slice %240 {offsets = [2, 0], sizes = [1, 128], strides = [1, 1]} : vector<3x128xf32> to vector<1x128xf32>
    %253 = arith.mulf %251, %252 : vector<1x128xf32>
    %254 = arith.addf %250, %253 : vector<1x128xf32>
    %255 = math.sqrt %254 : vector<1x128xf32>
    %256 = vector.extract_strided_slice %243 {offsets = [0, 0], sizes = [1, 128], strides = [1, 1]} : vector<3x128xf32> to vector<1x128xf32>
    %257 = vector.extract_strided_slice %243 {offsets = [0, 0], sizes = [1, 128], strides = [1, 1]} : vector<3x128xf32> to vector<1x128xf32>
    %258 = arith.mulf %256, %257 : vector<1x128xf32>
    %259 = vector.extract_strided_slice %243 {offsets = [1, 0], sizes = [1, 128], strides = [1, 1]} : vector<3x128xf32> to vector<1x128xf32>
    %260 = vector.extract_strided_slice %243 {offsets = [1, 0], sizes = [1, 128], strides = [1, 1]} : vector<3x128xf32> to vector<1x128xf32>
    %261 = arith.mulf %259, %260 : vector<1x128xf32>
    %262 = arith.addf %258, %261 : vector<1x128xf32>
    %263 = vector.extract_strided_slice %243 {offsets = [2, 0], sizes = [1, 128], strides = [1, 1]} : vector<3x128xf32> to vector<1x128xf32>
    %264 = vector.extract_strided_slice %243 {offsets = [2, 0], sizes = [1, 128], strides = [1, 1]} : vector<3x128xf32> to vector<1x128xf32>
    %265 = arith.mulf %263, %264 : vector<1x128xf32>
    %266 = arith.addf %262, %265 : vector<1x128xf32>
    %267 = math.sqrt %266 : vector<1x128xf32>
    %268 = arith.subf %255, %267 : vector<1x128xf32>
    %269 = arith.mulf %268, %268 : vector<1x128xf32>
    %270 = arith.addf %237, %269 : vector<1x128xf32>
    %271 = vector.extract_strided_slice %0 {offsets = [0, 0], sizes = [3, 128], strides = [1, 1]} : vector<63x128xf32> to vector<3x128xf32>
    %272 = vector.extract_strided_slice %0 {offsets = [27, 0], sizes = [3, 128], strides = [1, 1]} : vector<63x128xf32> to vector<3x128xf32>
    %273 = arith.subf %271, %272 : vector<3x128xf32>
    %274 = vector.extract_strided_slice %1 {offsets = [0, 0], sizes = [3, 128], strides = [1, 1]} : vector<63x128xf32> to vector<3x128xf32>
    %275 = vector.extract_strided_slice %1 {offsets = [27, 0], sizes = [3, 128], strides = [1, 1]} : vector<63x128xf32> to vector<3x128xf32>
    %276 = arith.subf %274, %275 : vector<3x128xf32>
    %277 = vector.extract_strided_slice %273 {offsets = [0, 0], sizes = [1, 128], strides = [1, 1]} : vector<3x128xf32> to vector<1x128xf32>
    %278 = vector.extract_strided_slice %273 {offsets = [0, 0], sizes = [1, 128], strides = [1, 1]} : vector<3x128xf32> to vector<1x128xf32>
    %279 = arith.mulf %277, %278 : vector<1x128xf32>
    %280 = vector.extract_strided_slice %273 {offsets = [1, 0], sizes = [1, 128], strides = [1, 1]} : vector<3x128xf32> to vector<1x128xf32>
    %281 = vector.extract_strided_slice %273 {offsets = [1, 0], sizes = [1, 128], strides = [1, 1]} : vector<3x128xf32> to vector<1x128xf32>
    %282 = arith.mulf %280, %281 : vector<1x128xf32>
    %283 = arith.addf %279, %282 : vector<1x128xf32>
    %284 = vector.extract_strided_slice %273 {offsets = [2, 0], sizes = [1, 128], strides = [1, 1]} : vector<3x128xf32> to vector<1x128xf32>
    %285 = vector.extract_strided_slice %273 {offsets = [2, 0], sizes = [1, 128], strides = [1, 1]} : vector<3x128xf32> to vector<1x128xf32>
    %286 = arith.mulf %284, %285 : vector<1x128xf32>
    %287 = arith.addf %283, %286 : vector<1x128xf32>
    %288 = math.sqrt %287 : vector<1x128xf32>
    %289 = vector.extract_strided_slice %276 {offsets = [0, 0], sizes = [1, 128], strides = [1, 1]} : vector<3x128xf32> to vector<1x128xf32>
    %290 = vector.extract_strided_slice %276 {offsets = [0, 0], sizes = [1, 128], strides = [1, 1]} : vector<3x128xf32> to vector<1x128xf32>
    %291 = arith.mulf %289, %290 : vector<1x128xf32>
    %292 = vector.extract_strided_slice %276 {offsets = [1, 0], sizes = [1, 128], strides = [1, 1]} : vector<3x128xf32> to vector<1x128xf32>
    %293 = vector.extract_strided_slice %276 {offsets = [1, 0], sizes = [1, 128], strides = [1, 1]} : vector<3x128xf32> to vector<1x128xf32>
    %294 = arith.mulf %292, %293 : vector<1x128xf32>
    %295 = arith.addf %291, %294 : vector<1x128xf32>
    %296 = vector.extract_strided_slice %276 {offsets = [2, 0], sizes = [1, 128], strides = [1, 1]} : vector<3x128xf32> to vector<1x128xf32>
    %297 = vector.extract_strided_slice %276 {offsets = [2, 0], sizes = [1, 128], strides = [1, 1]} : vector<3x128xf32> to vector<1x128xf32>
    %298 = arith.mulf %296, %297 : vector<1x128xf32>
    %299 = arith.addf %295, %298 : vector<1x128xf32>
    %300 = math.sqrt %299 : vector<1x128xf32>
    %301 = arith.subf %288, %300 : vector<1x128xf32>
    %302 = arith.mulf %301, %301 : vector<1x128xf32>
    %303 = arith.addf %270, %302 : vector<1x128xf32>
    %304 = vector.extract_strided_slice %0 {offsets = [27, 0], sizes = [3, 128], strides = [1, 1]} : vector<63x128xf32> to vector<3x128xf32>
    %305 = vector.extract_strided_slice %0 {offsets = [30, 0], sizes = [3, 128], strides = [1, 1]} : vector<63x128xf32> to vector<3x128xf32>
    %306 = arith.subf %304, %305 : vector<3x128xf32>
    %307 = vector.extract_strided_slice %1 {offsets = [27, 0], sizes = [3, 128], strides = [1, 1]} : vector<63x128xf32> to vector<3x128xf32>
    %308 = vector.extract_strided_slice %1 {offsets = [30, 0], sizes = [3, 128], strides = [1, 1]} : vector<63x128xf32> to vector<3x128xf32>
    %309 = arith.subf %307, %308 : vector<3x128xf32>
    %310 = vector.extract_strided_slice %306 {offsets = [0, 0], sizes = [1, 128], strides = [1, 1]} : vector<3x128xf32> to vector<1x128xf32>
    %311 = vector.extract_strided_slice %306 {offsets = [0, 0], sizes = [1, 128], strides = [1, 1]} : vector<3x128xf32> to vector<1x128xf32>
    %312 = arith.mulf %310, %311 : vector<1x128xf32>
    %313 = vector.extract_strided_slice %306 {offsets = [1, 0], sizes = [1, 128], strides = [1, 1]} : vector<3x128xf32> to vector<1x128xf32>
    %314 = vector.extract_strided_slice %306 {offsets = [1, 0], sizes = [1, 128], strides = [1, 1]} : vector<3x128xf32> to vector<1x128xf32>
    %315 = arith.mulf %313, %314 : vector<1x128xf32>
    %316 = arith.addf %312, %315 : vector<1x128xf32>
    %317 = vector.extract_strided_slice %306 {offsets = [2, 0], sizes = [1, 128], strides = [1, 1]} : vector<3x128xf32> to vector<1x128xf32>
    %318 = vector.extract_strided_slice %306 {offsets = [2, 0], sizes = [1, 128], strides = [1, 1]} : vector<3x128xf32> to vector<1x128xf32>
    %319 = arith.mulf %317, %318 : vector<1x128xf32>
    %320 = arith.addf %316, %319 : vector<1x128xf32>
    %321 = math.sqrt %320 : vector<1x128xf32>
    %322 = vector.extract_strided_slice %309 {offsets = [0, 0], sizes = [1, 128], strides = [1, 1]} : vector<3x128xf32> to vector<1x128xf32>
    %323 = vector.extract_strided_slice %309 {offsets = [0, 0], sizes = [1, 128], strides = [1, 1]} : vector<3x128xf32> to vector<1x128xf32>
    %324 = arith.mulf %322, %323 : vector<1x128xf32>
    %325 = vector.extract_strided_slice %309 {offsets = [1, 0], sizes = [1, 128], strides = [1, 1]} : vector<3x128xf32> to vector<1x128xf32>
    %326 = vector.extract_strided_slice %309 {offsets = [1, 0], sizes = [1, 128], strides = [1, 1]} : vector<3x128xf32> to vector<1x128xf32>
    %327 = arith.mulf %325, %326 : vector<1x128xf32>
    %328 = arith.addf %324, %327 : vector<1x128xf32>
    %329 = vector.extract_strided_slice %309 {offsets = [2, 0], sizes = [1, 128], strides = [1, 1]} : vector<3x128xf32> to vector<1x128xf32>
    %330 = vector.extract_strided_slice %309 {offsets = [2, 0], sizes = [1, 128], strides = [1, 1]} : vector<3x128xf32> to vector<1x128xf32>
    %331 = arith.mulf %329, %330 : vector<1x128xf32>
    %332 = arith.addf %328, %331 : vector<1x128xf32>
    %333 = math.sqrt %332 : vector<1x128xf32>
    %334 = arith.subf %321, %333 : vector<1x128xf32>
    %335 = arith.mulf %334, %334 : vector<1x128xf32>
    %336 = arith.addf %303, %335 : vector<1x128xf32>
    %337 = vector.extract_strided_slice %0 {offsets = [30, 0], sizes = [3, 128], strides = [1, 1]} : vector<63x128xf32> to vector<3x128xf32>
    %338 = vector.extract_strided_slice %0 {offsets = [33, 0], sizes = [3, 128], strides = [1, 1]} : vector<63x128xf32> to vector<3x128xf32>
    %339 = arith.subf %337, %338 : vector<3x128xf32>
    %340 = vector.extract_strided_slice %1 {offsets = [30, 0], sizes = [3, 128], strides = [1, 1]} : vector<63x128xf32> to vector<3x128xf32>
    %341 = vector.extract_strided_slice %1 {offsets = [33, 0], sizes = [3, 128], strides = [1, 1]} : vector<63x128xf32> to vector<3x128xf32>
    %342 = arith.subf %340, %341 : vector<3x128xf32>
    %343 = vector.extract_strided_slice %339 {offsets = [0, 0], sizes = [1, 128], strides = [1, 1]} : vector<3x128xf32> to vector<1x128xf32>
    %344 = vector.extract_strided_slice %339 {offsets = [0, 0], sizes = [1, 128], strides = [1, 1]} : vector<3x128xf32> to vector<1x128xf32>
    %345 = arith.mulf %343, %344 : vector<1x128xf32>
    %346 = vector.extract_strided_slice %339 {offsets = [1, 0], sizes = [1, 128], strides = [1, 1]} : vector<3x128xf32> to vector<1x128xf32>
    %347 = vector.extract_strided_slice %339 {offsets = [1, 0], sizes = [1, 128], strides = [1, 1]} : vector<3x128xf32> to vector<1x128xf32>
    %348 = arith.mulf %346, %347 : vector<1x128xf32>
    %349 = arith.addf %345, %348 : vector<1x128xf32>
    %350 = vector.extract_strided_slice %339 {offsets = [2, 0], sizes = [1, 128], strides = [1, 1]} : vector<3x128xf32> to vector<1x128xf32>
    %351 = vector.extract_strided_slice %339 {offsets = [2, 0], sizes = [1, 128], strides = [1, 1]} : vector<3x128xf32> to vector<1x128xf32>
    %352 = arith.mulf %350, %351 : vector<1x128xf32>
    %353 = arith.addf %349, %352 : vector<1x128xf32>
    %354 = math.sqrt %353 : vector<1x128xf32>
    %355 = vector.extract_strided_slice %342 {offsets = [0, 0], sizes = [1, 128], strides = [1, 1]} : vector<3x128xf32> to vector<1x128xf32>
    %356 = vector.extract_strided_slice %342 {offsets = [0, 0], sizes = [1, 128], strides = [1, 1]} : vector<3x128xf32> to vector<1x128xf32>
    %357 = arith.mulf %355, %356 : vector<1x128xf32>
    %358 = vector.extract_strided_slice %342 {offsets = [1, 0], sizes = [1, 128], strides = [1, 1]} : vector<3x128xf32> to vector<1x128xf32>
    %359 = vector.extract_strided_slice %342 {offsets = [1, 0], sizes = [1, 128], strides = [1, 1]} : vector<3x128xf32> to vector<1x128xf32>
    %360 = arith.mulf %358, %359 : vector<1x128xf32>
    %361 = arith.addf %357, %360 : vector<1x128xf32>
    %362 = vector.extract_strided_slice %342 {offsets = [2, 0], sizes = [1, 128], strides = [1, 1]} : vector<3x128xf32> to vector<1x128xf32>
    %363 = vector.extract_strided_slice %342 {offsets = [2, 0], sizes = [1, 128], strides = [1, 1]} : vector<3x128xf32> to vector<1x128xf32>
    %364 = arith.mulf %362, %363 : vector<1x128xf32>
    %365 = arith.addf %361, %364 : vector<1x128xf32>
    %366 = math.sqrt %365 : vector<1x128xf32>
    %367 = arith.subf %354, %366 : vector<1x128xf32>
    %368 = arith.mulf %367, %367 : vector<1x128xf32>
    %369 = arith.addf %336, %368 : vector<1x128xf32>
    %370 = vector.extract_strided_slice %0 {offsets = [33, 0], sizes = [3, 128], strides = [1, 1]} : vector<63x128xf32> to vector<3x128xf32>
    %371 = vector.extract_strided_slice %0 {offsets = [36, 0], sizes = [3, 128], strides = [1, 1]} : vector<63x128xf32> to vector<3x128xf32>
    %372 = arith.subf %370, %371 : vector<3x128xf32>
    %373 = vector.extract_strided_slice %1 {offsets = [33, 0], sizes = [3, 128], strides = [1, 1]} : vector<63x128xf32> to vector<3x128xf32>
    %374 = vector.extract_strided_slice %1 {offsets = [36, 0], sizes = [3, 128], strides = [1, 1]} : vector<63x128xf32> to vector<3x128xf32>
    %375 = arith.subf %373, %374 : vector<3x128xf32>
    %376 = vector.extract_strided_slice %372 {offsets = [0, 0], sizes = [1, 128], strides = [1, 1]} : vector<3x128xf32> to vector<1x128xf32>
    %377 = vector.extract_strided_slice %372 {offsets = [0, 0], sizes = [1, 128], strides = [1, 1]} : vector<3x128xf32> to vector<1x128xf32>
    %378 = arith.mulf %376, %377 : vector<1x128xf32>
    %379 = vector.extract_strided_slice %372 {offsets = [1, 0], sizes = [1, 128], strides = [1, 1]} : vector<3x128xf32> to vector<1x128xf32>
    %380 = vector.extract_strided_slice %372 {offsets = [1, 0], sizes = [1, 128], strides = [1, 1]} : vector<3x128xf32> to vector<1x128xf32>
    %381 = arith.mulf %379, %380 : vector<1x128xf32>
    %382 = arith.addf %378, %381 : vector<1x128xf32>
    %383 = vector.extract_strided_slice %372 {offsets = [2, 0], sizes = [1, 128], strides = [1, 1]} : vector<3x128xf32> to vector<1x128xf32>
    %384 = vector.extract_strided_slice %372 {offsets = [2, 0], sizes = [1, 128], strides = [1, 1]} : vector<3x128xf32> to vector<1x128xf32>
    %385 = arith.mulf %383, %384 : vector<1x128xf32>
    %386 = arith.addf %382, %385 : vector<1x128xf32>
    %387 = math.sqrt %386 : vector<1x128xf32>
    %388 = vector.extract_strided_slice %375 {offsets = [0, 0], sizes = [1, 128], strides = [1, 1]} : vector<3x128xf32> to vector<1x128xf32>
    %389 = vector.extract_strided_slice %375 {offsets = [0, 0], sizes = [1, 128], strides = [1, 1]} : vector<3x128xf32> to vector<1x128xf32>
    %390 = arith.mulf %388, %389 : vector<1x128xf32>
    %391 = vector.extract_strided_slice %375 {offsets = [1, 0], sizes = [1, 128], strides = [1, 1]} : vector<3x128xf32> to vector<1x128xf32>
    %392 = vector.extract_strided_slice %375 {offsets = [1, 0], sizes = [1, 128], strides = [1, 1]} : vector<3x128xf32> to vector<1x128xf32>
    %393 = arith.mulf %391, %392 : vector<1x128xf32>
    %394 = arith.addf %390, %393 : vector<1x128xf32>
    %395 = vector.extract_strided_slice %375 {offsets = [2, 0], sizes = [1, 128], strides = [1, 1]} : vector<3x128xf32> to vector<1x128xf32>
    %396 = vector.extract_strided_slice %375 {offsets = [2, 0], sizes = [1, 128], strides = [1, 1]} : vector<3x128xf32> to vector<1x128xf32>
    %397 = arith.mulf %395, %396 : vector<1x128xf32>
    %398 = arith.addf %394, %397 : vector<1x128xf32>
    %399 = math.sqrt %398 : vector<1x128xf32>
    %400 = arith.subf %387, %399 : vector<1x128xf32>
    %401 = arith.mulf %400, %400 : vector<1x128xf32>
    %402 = arith.addf %369, %401 : vector<1x128xf32>
    %403 = vector.extract_strided_slice %0 {offsets = [0, 0], sizes = [3, 128], strides = [1, 1]} : vector<63x128xf32> to vector<3x128xf32>
    %404 = vector.extract_strided_slice %0 {offsets = [39, 0], sizes = [3, 128], strides = [1, 1]} : vector<63x128xf32> to vector<3x128xf32>
    %405 = arith.subf %403, %404 : vector<3x128xf32>
    %406 = vector.extract_strided_slice %1 {offsets = [0, 0], sizes = [3, 128], strides = [1, 1]} : vector<63x128xf32> to vector<3x128xf32>
    %407 = vector.extract_strided_slice %1 {offsets = [39, 0], sizes = [3, 128], strides = [1, 1]} : vector<63x128xf32> to vector<3x128xf32>
    %408 = arith.subf %406, %407 : vector<3x128xf32>
    %409 = vector.extract_strided_slice %405 {offsets = [0, 0], sizes = [1, 128], strides = [1, 1]} : vector<3x128xf32> to vector<1x128xf32>
    %410 = vector.extract_strided_slice %405 {offsets = [0, 0], sizes = [1, 128], strides = [1, 1]} : vector<3x128xf32> to vector<1x128xf32>
    %411 = arith.mulf %409, %410 : vector<1x128xf32>
    %412 = vector.extract_strided_slice %405 {offsets = [1, 0], sizes = [1, 128], strides = [1, 1]} : vector<3x128xf32> to vector<1x128xf32>
    %413 = vector.extract_strided_slice %405 {offsets = [1, 0], sizes = [1, 128], strides = [1, 1]} : vector<3x128xf32> to vector<1x128xf32>
    %414 = arith.mulf %412, %413 : vector<1x128xf32>
    %415 = arith.addf %411, %414 : vector<1x128xf32>
    %416 = vector.extract_strided_slice %405 {offsets = [2, 0], sizes = [1, 128], strides = [1, 1]} : vector<3x128xf32> to vector<1x128xf32>
    %417 = vector.extract_strided_slice %405 {offsets = [2, 0], sizes = [1, 128], strides = [1, 1]} : vector<3x128xf32> to vector<1x128xf32>
    %418 = arith.mulf %416, %417 : vector<1x128xf32>
    %419 = arith.addf %415, %418 : vector<1x128xf32>
    %420 = math.sqrt %419 : vector<1x128xf32>
    %421 = vector.extract_strided_slice %408 {offsets = [0, 0], sizes = [1, 128], strides = [1, 1]} : vector<3x128xf32> to vector<1x128xf32>
    %422 = vector.extract_strided_slice %408 {offsets = [0, 0], sizes = [1, 128], strides = [1, 1]} : vector<3x128xf32> to vector<1x128xf32>
    %423 = arith.mulf %421, %422 : vector<1x128xf32>
    %424 = vector.extract_strided_slice %408 {offsets = [1, 0], sizes = [1, 128], strides = [1, 1]} : vector<3x128xf32> to vector<1x128xf32>
    %425 = vector.extract_strided_slice %408 {offsets = [1, 0], sizes = [1, 128], strides = [1, 1]} : vector<3x128xf32> to vector<1x128xf32>
    %426 = arith.mulf %424, %425 : vector<1x128xf32>
    %427 = arith.addf %423, %426 : vector<1x128xf32>
    %428 = vector.extract_strided_slice %408 {offsets = [2, 0], sizes = [1, 128], strides = [1, 1]} : vector<3x128xf32> to vector<1x128xf32>
    %429 = vector.extract_strided_slice %408 {offsets = [2, 0], sizes = [1, 128], strides = [1, 1]} : vector<3x128xf32> to vector<1x128xf32>
    %430 = arith.mulf %428, %429 : vector<1x128xf32>
    %431 = arith.addf %427, %430 : vector<1x128xf32>
    %432 = math.sqrt %431 : vector<1x128xf32>
    %433 = arith.subf %420, %432 : vector<1x128xf32>
    %434 = arith.mulf %433, %433 : vector<1x128xf32>
    %435 = arith.addf %402, %434 : vector<1x128xf32>
    %436 = vector.extract_strided_slice %0 {offsets = [39, 0], sizes = [3, 128], strides = [1, 1]} : vector<63x128xf32> to vector<3x128xf32>
    %437 = vector.extract_strided_slice %0 {offsets = [42, 0], sizes = [3, 128], strides = [1, 1]} : vector<63x128xf32> to vector<3x128xf32>
    %438 = arith.subf %436, %437 : vector<3x128xf32>
    %439 = vector.extract_strided_slice %1 {offsets = [39, 0], sizes = [3, 128], strides = [1, 1]} : vector<63x128xf32> to vector<3x128xf32>
    %440 = vector.extract_strided_slice %1 {offsets = [42, 0], sizes = [3, 128], strides = [1, 1]} : vector<63x128xf32> to vector<3x128xf32>
    %441 = arith.subf %439, %440 : vector<3x128xf32>
    %442 = vector.extract_strided_slice %438 {offsets = [0, 0], sizes = [1, 128], strides = [1, 1]} : vector<3x128xf32> to vector<1x128xf32>
    %443 = vector.extract_strided_slice %438 {offsets = [0, 0], sizes = [1, 128], strides = [1, 1]} : vector<3x128xf32> to vector<1x128xf32>
    %444 = arith.mulf %442, %443 : vector<1x128xf32>
    %445 = vector.extract_strided_slice %438 {offsets = [1, 0], sizes = [1, 128], strides = [1, 1]} : vector<3x128xf32> to vector<1x128xf32>
    %446 = vector.extract_strided_slice %438 {offsets = [1, 0], sizes = [1, 128], strides = [1, 1]} : vector<3x128xf32> to vector<1x128xf32>
    %447 = arith.mulf %445, %446 : vector<1x128xf32>
    %448 = arith.addf %444, %447 : vector<1x128xf32>
    %449 = vector.extract_strided_slice %438 {offsets = [2, 0], sizes = [1, 128], strides = [1, 1]} : vector<3x128xf32> to vector<1x128xf32>
    %450 = vector.extract_strided_slice %438 {offsets = [2, 0], sizes = [1, 128], strides = [1, 1]} : vector<3x128xf32> to vector<1x128xf32>
    %451 = arith.mulf %449, %450 : vector<1x128xf32>
    %452 = arith.addf %448, %451 : vector<1x128xf32>
    %453 = math.sqrt %452 : vector<1x128xf32>
    %454 = vector.extract_strided_slice %441 {offsets = [0, 0], sizes = [1, 128], strides = [1, 1]} : vector<3x128xf32> to vector<1x128xf32>
    %455 = vector.extract_strided_slice %441 {offsets = [0, 0], sizes = [1, 128], strides = [1, 1]} : vector<3x128xf32> to vector<1x128xf32>
    %456 = arith.mulf %454, %455 : vector<1x128xf32>
    %457 = vector.extract_strided_slice %441 {offsets = [1, 0], sizes = [1, 128], strides = [1, 1]} : vector<3x128xf32> to vector<1x128xf32>
    %458 = vector.extract_strided_slice %441 {offsets = [1, 0], sizes = [1, 128], strides = [1, 1]} : vector<3x128xf32> to vector<1x128xf32>
    %459 = arith.mulf %457, %458 : vector<1x128xf32>
    %460 = arith.addf %456, %459 : vector<1x128xf32>
    %461 = vector.extract_strided_slice %441 {offsets = [2, 0], sizes = [1, 128], strides = [1, 1]} : vector<3x128xf32> to vector<1x128xf32>
    %462 = vector.extract_strided_slice %441 {offsets = [2, 0], sizes = [1, 128], strides = [1, 1]} : vector<3x128xf32> to vector<1x128xf32>
    %463 = arith.mulf %461, %462 : vector<1x128xf32>
    %464 = arith.addf %460, %463 : vector<1x128xf32>
    %465 = math.sqrt %464 : vector<1x128xf32>
    %466 = arith.subf %453, %465 : vector<1x128xf32>
    %467 = arith.mulf %466, %466 : vector<1x128xf32>
    %468 = arith.addf %435, %467 : vector<1x128xf32>
    %469 = vector.extract_strided_slice %0 {offsets = [42, 0], sizes = [3, 128], strides = [1, 1]} : vector<63x128xf32> to vector<3x128xf32>
    %470 = vector.extract_strided_slice %0 {offsets = [45, 0], sizes = [3, 128], strides = [1, 1]} : vector<63x128xf32> to vector<3x128xf32>
    %471 = arith.subf %469, %470 : vector<3x128xf32>
    %472 = vector.extract_strided_slice %1 {offsets = [42, 0], sizes = [3, 128], strides = [1, 1]} : vector<63x128xf32> to vector<3x128xf32>
    %473 = vector.extract_strided_slice %1 {offsets = [45, 0], sizes = [3, 128], strides = [1, 1]} : vector<63x128xf32> to vector<3x128xf32>
    %474 = arith.subf %472, %473 : vector<3x128xf32>
    %475 = vector.extract_strided_slice %471 {offsets = [0, 0], sizes = [1, 128], strides = [1, 1]} : vector<3x128xf32> to vector<1x128xf32>
    %476 = vector.extract_strided_slice %471 {offsets = [0, 0], sizes = [1, 128], strides = [1, 1]} : vector<3x128xf32> to vector<1x128xf32>
    %477 = arith.mulf %475, %476 : vector<1x128xf32>
    %478 = vector.extract_strided_slice %471 {offsets = [1, 0], sizes = [1, 128], strides = [1, 1]} : vector<3x128xf32> to vector<1x128xf32>
    %479 = vector.extract_strided_slice %471 {offsets = [1, 0], sizes = [1, 128], strides = [1, 1]} : vector<3x128xf32> to vector<1x128xf32>
    %480 = arith.mulf %478, %479 : vector<1x128xf32>
    %481 = arith.addf %477, %480 : vector<1x128xf32>
    %482 = vector.extract_strided_slice %471 {offsets = [2, 0], sizes = [1, 128], strides = [1, 1]} : vector<3x128xf32> to vector<1x128xf32>
    %483 = vector.extract_strided_slice %471 {offsets = [2, 0], sizes = [1, 128], strides = [1, 1]} : vector<3x128xf32> to vector<1x128xf32>
    %484 = arith.mulf %482, %483 : vector<1x128xf32>
    %485 = arith.addf %481, %484 : vector<1x128xf32>
    %486 = math.sqrt %485 : vector<1x128xf32>
    %487 = vector.extract_strided_slice %474 {offsets = [0, 0], sizes = [1, 128], strides = [1, 1]} : vector<3x128xf32> to vector<1x128xf32>
    %488 = vector.extract_strided_slice %474 {offsets = [0, 0], sizes = [1, 128], strides = [1, 1]} : vector<3x128xf32> to vector<1x128xf32>
    %489 = arith.mulf %487, %488 : vector<1x128xf32>
    %490 = vector.extract_strided_slice %474 {offsets = [1, 0], sizes = [1, 128], strides = [1, 1]} : vector<3x128xf32> to vector<1x128xf32>
    %491 = vector.extract_strided_slice %474 {offsets = [1, 0], sizes = [1, 128], strides = [1, 1]} : vector<3x128xf32> to vector<1x128xf32>
    %492 = arith.mulf %490, %491 : vector<1x128xf32>
    %493 = arith.addf %489, %492 : vector<1x128xf32>
    %494 = vector.extract_strided_slice %474 {offsets = [2, 0], sizes = [1, 128], strides = [1, 1]} : vector<3x128xf32> to vector<1x128xf32>
    %495 = vector.extract_strided_slice %474 {offsets = [2, 0], sizes = [1, 128], strides = [1, 1]} : vector<3x128xf32> to vector<1x128xf32>
    %496 = arith.mulf %494, %495 : vector<1x128xf32>
    %497 = arith.addf %493, %496 : vector<1x128xf32>
    %498 = math.sqrt %497 : vector<1x128xf32>
    %499 = arith.subf %486, %498 : vector<1x128xf32>
    %500 = arith.mulf %499, %499 : vector<1x128xf32>
    %501 = arith.addf %468, %500 : vector<1x128xf32>
    %502 = vector.extract_strided_slice %0 {offsets = [45, 0], sizes = [3, 128], strides = [1, 1]} : vector<63x128xf32> to vector<3x128xf32>
    %503 = vector.extract_strided_slice %0 {offsets = [48, 0], sizes = [3, 128], strides = [1, 1]} : vector<63x128xf32> to vector<3x128xf32>
    %504 = arith.subf %502, %503 : vector<3x128xf32>
    %505 = vector.extract_strided_slice %1 {offsets = [45, 0], sizes = [3, 128], strides = [1, 1]} : vector<63x128xf32> to vector<3x128xf32>
    %506 = vector.extract_strided_slice %1 {offsets = [48, 0], sizes = [3, 128], strides = [1, 1]} : vector<63x128xf32> to vector<3x128xf32>
    %507 = arith.subf %505, %506 : vector<3x128xf32>
    %508 = vector.extract_strided_slice %504 {offsets = [0, 0], sizes = [1, 128], strides = [1, 1]} : vector<3x128xf32> to vector<1x128xf32>
    %509 = vector.extract_strided_slice %504 {offsets = [0, 0], sizes = [1, 128], strides = [1, 1]} : vector<3x128xf32> to vector<1x128xf32>
    %510 = arith.mulf %508, %509 : vector<1x128xf32>
    %511 = vector.extract_strided_slice %504 {offsets = [1, 0], sizes = [1, 128], strides = [1, 1]} : vector<3x128xf32> to vector<1x128xf32>
    %512 = vector.extract_strided_slice %504 {offsets = [1, 0], sizes = [1, 128], strides = [1, 1]} : vector<3x128xf32> to vector<1x128xf32>
    %513 = arith.mulf %511, %512 : vector<1x128xf32>
    %514 = arith.addf %510, %513 : vector<1x128xf32>
    %515 = vector.extract_strided_slice %504 {offsets = [2, 0], sizes = [1, 128], strides = [1, 1]} : vector<3x128xf32> to vector<1x128xf32>
    %516 = vector.extract_strided_slice %504 {offsets = [2, 0], sizes = [1, 128], strides = [1, 1]} : vector<3x128xf32> to vector<1x128xf32>
    %517 = arith.mulf %515, %516 : vector<1x128xf32>
    %518 = arith.addf %514, %517 : vector<1x128xf32>
    %519 = math.sqrt %518 : vector<1x128xf32>
    %520 = vector.extract_strided_slice %507 {offsets = [0, 0], sizes = [1, 128], strides = [1, 1]} : vector<3x128xf32> to vector<1x128xf32>
    %521 = vector.extract_strided_slice %507 {offsets = [0, 0], sizes = [1, 128], strides = [1, 1]} : vector<3x128xf32> to vector<1x128xf32>
    %522 = arith.mulf %520, %521 : vector<1x128xf32>
    %523 = vector.extract_strided_slice %507 {offsets = [1, 0], sizes = [1, 128], strides = [1, 1]} : vector<3x128xf32> to vector<1x128xf32>
    %524 = vector.extract_strided_slice %507 {offsets = [1, 0], sizes = [1, 128], strides = [1, 1]} : vector<3x128xf32> to vector<1x128xf32>
    %525 = arith.mulf %523, %524 : vector<1x128xf32>
    %526 = arith.addf %522, %525 : vector<1x128xf32>
    %527 = vector.extract_strided_slice %507 {offsets = [2, 0], sizes = [1, 128], strides = [1, 1]} : vector<3x128xf32> to vector<1x128xf32>
    %528 = vector.extract_strided_slice %507 {offsets = [2, 0], sizes = [1, 128], strides = [1, 1]} : vector<3x128xf32> to vector<1x128xf32>
    %529 = arith.mulf %527, %528 : vector<1x128xf32>
    %530 = arith.addf %526, %529 : vector<1x128xf32>
    %531 = math.sqrt %530 : vector<1x128xf32>
    %532 = arith.subf %519, %531 : vector<1x128xf32>
    %533 = arith.mulf %532, %532 : vector<1x128xf32>
    %534 = arith.addf %501, %533 : vector<1x128xf32>
    %535 = vector.extract_strided_slice %0 {offsets = [0, 0], sizes = [3, 128], strides = [1, 1]} : vector<63x128xf32> to vector<3x128xf32>
    %536 = vector.extract_strided_slice %0 {offsets = [51, 0], sizes = [3, 128], strides = [1, 1]} : vector<63x128xf32> to vector<3x128xf32>
    %537 = arith.subf %535, %536 : vector<3x128xf32>
    %538 = vector.extract_strided_slice %1 {offsets = [0, 0], sizes = [3, 128], strides = [1, 1]} : vector<63x128xf32> to vector<3x128xf32>
    %539 = vector.extract_strided_slice %1 {offsets = [51, 0], sizes = [3, 128], strides = [1, 1]} : vector<63x128xf32> to vector<3x128xf32>
    %540 = arith.subf %538, %539 : vector<3x128xf32>
    %541 = vector.extract_strided_slice %537 {offsets = [0, 0], sizes = [1, 128], strides = [1, 1]} : vector<3x128xf32> to vector<1x128xf32>
    %542 = vector.extract_strided_slice %537 {offsets = [0, 0], sizes = [1, 128], strides = [1, 1]} : vector<3x128xf32> to vector<1x128xf32>
    %543 = arith.mulf %541, %542 : vector<1x128xf32>
    %544 = vector.extract_strided_slice %537 {offsets = [1, 0], sizes = [1, 128], strides = [1, 1]} : vector<3x128xf32> to vector<1x128xf32>
    %545 = vector.extract_strided_slice %537 {offsets = [1, 0], sizes = [1, 128], strides = [1, 1]} : vector<3x128xf32> to vector<1x128xf32>
    %546 = arith.mulf %544, %545 : vector<1x128xf32>
    %547 = arith.addf %543, %546 : vector<1x128xf32>
    %548 = vector.extract_strided_slice %537 {offsets = [2, 0], sizes = [1, 128], strides = [1, 1]} : vector<3x128xf32> to vector<1x128xf32>
    %549 = vector.extract_strided_slice %537 {offsets = [2, 0], sizes = [1, 128], strides = [1, 1]} : vector<3x128xf32> to vector<1x128xf32>
    %550 = arith.mulf %548, %549 : vector<1x128xf32>
    %551 = arith.addf %547, %550 : vector<1x128xf32>
    %552 = math.sqrt %551 : vector<1x128xf32>
    %553 = vector.extract_strided_slice %540 {offsets = [0, 0], sizes = [1, 128], strides = [1, 1]} : vector<3x128xf32> to vector<1x128xf32>
    %554 = vector.extract_strided_slice %540 {offsets = [0, 0], sizes = [1, 128], strides = [1, 1]} : vector<3x128xf32> to vector<1x128xf32>
    %555 = arith.mulf %553, %554 : vector<1x128xf32>
    %556 = vector.extract_strided_slice %540 {offsets = [1, 0], sizes = [1, 128], strides = [1, 1]} : vector<3x128xf32> to vector<1x128xf32>
    %557 = vector.extract_strided_slice %540 {offsets = [1, 0], sizes = [1, 128], strides = [1, 1]} : vector<3x128xf32> to vector<1x128xf32>
    %558 = arith.mulf %556, %557 : vector<1x128xf32>
    %559 = arith.addf %555, %558 : vector<1x128xf32>
    %560 = vector.extract_strided_slice %540 {offsets = [2, 0], sizes = [1, 128], strides = [1, 1]} : vector<3x128xf32> to vector<1x128xf32>
    %561 = vector.extract_strided_slice %540 {offsets = [2, 0], sizes = [1, 128], strides = [1, 1]} : vector<3x128xf32> to vector<1x128xf32>
    %562 = arith.mulf %560, %561 : vector<1x128xf32>
    %563 = arith.addf %559, %562 : vector<1x128xf32>
    %564 = math.sqrt %563 : vector<1x128xf32>
    %565 = arith.subf %552, %564 : vector<1x128xf32>
    %566 = arith.mulf %565, %565 : vector<1x128xf32>
    %567 = arith.addf %534, %566 : vector<1x128xf32>
    %568 = vector.extract_strided_slice %0 {offsets = [51, 0], sizes = [3, 128], strides = [1, 1]} : vector<63x128xf32> to vector<3x128xf32>
    %569 = vector.extract_strided_slice %0 {offsets = [54, 0], sizes = [3, 128], strides = [1, 1]} : vector<63x128xf32> to vector<3x128xf32>
    %570 = arith.subf %568, %569 : vector<3x128xf32>
    %571 = vector.extract_strided_slice %1 {offsets = [51, 0], sizes = [3, 128], strides = [1, 1]} : vector<63x128xf32> to vector<3x128xf32>
    %572 = vector.extract_strided_slice %1 {offsets = [54, 0], sizes = [3, 128], strides = [1, 1]} : vector<63x128xf32> to vector<3x128xf32>
    %573 = arith.subf %571, %572 : vector<3x128xf32>
    %574 = vector.extract_strided_slice %570 {offsets = [0, 0], sizes = [1, 128], strides = [1, 1]} : vector<3x128xf32> to vector<1x128xf32>
    %575 = vector.extract_strided_slice %570 {offsets = [0, 0], sizes = [1, 128], strides = [1, 1]} : vector<3x128xf32> to vector<1x128xf32>
    %576 = arith.mulf %574, %575 : vector<1x128xf32>
    %577 = vector.extract_strided_slice %570 {offsets = [1, 0], sizes = [1, 128], strides = [1, 1]} : vector<3x128xf32> to vector<1x128xf32>
    %578 = vector.extract_strided_slice %570 {offsets = [1, 0], sizes = [1, 128], strides = [1, 1]} : vector<3x128xf32> to vector<1x128xf32>
    %579 = arith.mulf %577, %578 : vector<1x128xf32>
    %580 = arith.addf %576, %579 : vector<1x128xf32>
    %581 = vector.extract_strided_slice %570 {offsets = [2, 0], sizes = [1, 128], strides = [1, 1]} : vector<3x128xf32> to vector<1x128xf32>
    %582 = vector.extract_strided_slice %570 {offsets = [2, 0], sizes = [1, 128], strides = [1, 1]} : vector<3x128xf32> to vector<1x128xf32>
    %583 = arith.mulf %581, %582 : vector<1x128xf32>
    %584 = arith.addf %580, %583 : vector<1x128xf32>
    %585 = math.sqrt %584 : vector<1x128xf32>
    %586 = vector.extract_strided_slice %573 {offsets = [0, 0], sizes = [1, 128], strides = [1, 1]} : vector<3x128xf32> to vector<1x128xf32>
    %587 = vector.extract_strided_slice %573 {offsets = [0, 0], sizes = [1, 128], strides = [1, 1]} : vector<3x128xf32> to vector<1x128xf32>
    %588 = arith.mulf %586, %587 : vector<1x128xf32>
    %589 = vector.extract_strided_slice %573 {offsets = [1, 0], sizes = [1, 128], strides = [1, 1]} : vector<3x128xf32> to vector<1x128xf32>
    %590 = vector.extract_strided_slice %573 {offsets = [1, 0], sizes = [1, 128], strides = [1, 1]} : vector<3x128xf32> to vector<1x128xf32>
    %591 = arith.mulf %589, %590 : vector<1x128xf32>
    %592 = arith.addf %588, %591 : vector<1x128xf32>
    %593 = vector.extract_strided_slice %573 {offsets = [2, 0], sizes = [1, 128], strides = [1, 1]} : vector<3x128xf32> to vector<1x128xf32>
    %594 = vector.extract_strided_slice %573 {offsets = [2, 0], sizes = [1, 128], strides = [1, 1]} : vector<3x128xf32> to vector<1x128xf32>
    %595 = arith.mulf %593, %594 : vector<1x128xf32>
    %596 = arith.addf %592, %595 : vector<1x128xf32>
    %597 = math.sqrt %596 : vector<1x128xf32>
    %598 = arith.subf %585, %597 : vector<1x128xf32>
    %599 = arith.mulf %598, %598 : vector<1x128xf32>
    %600 = arith.addf %567, %599 : vector<1x128xf32>
    %601 = vector.extract_strided_slice %0 {offsets = [54, 0], sizes = [3, 128], strides = [1, 1]} : vector<63x128xf32> to vector<3x128xf32>
    %602 = vector.extract_strided_slice %0 {offsets = [57, 0], sizes = [3, 128], strides = [1, 1]} : vector<63x128xf32> to vector<3x128xf32>
    %603 = arith.subf %601, %602 : vector<3x128xf32>
    %604 = vector.extract_strided_slice %1 {offsets = [54, 0], sizes = [3, 128], strides = [1, 1]} : vector<63x128xf32> to vector<3x128xf32>
    %605 = vector.extract_strided_slice %1 {offsets = [57, 0], sizes = [3, 128], strides = [1, 1]} : vector<63x128xf32> to vector<3x128xf32>
    %606 = arith.subf %604, %605 : vector<3x128xf32>
    %607 = vector.extract_strided_slice %603 {offsets = [0, 0], sizes = [1, 128], strides = [1, 1]} : vector<3x128xf32> to vector<1x128xf32>
    %608 = vector.extract_strided_slice %603 {offsets = [0, 0], sizes = [1, 128], strides = [1, 1]} : vector<3x128xf32> to vector<1x128xf32>
    %609 = arith.mulf %607, %608 : vector<1x128xf32>
    %610 = vector.extract_strided_slice %603 {offsets = [1, 0], sizes = [1, 128], strides = [1, 1]} : vector<3x128xf32> to vector<1x128xf32>
    %611 = vector.extract_strided_slice %603 {offsets = [1, 0], sizes = [1, 128], strides = [1, 1]} : vector<3x128xf32> to vector<1x128xf32>
    %612 = arith.mulf %610, %611 : vector<1x128xf32>
    %613 = arith.addf %609, %612 : vector<1x128xf32>
    %614 = vector.extract_strided_slice %603 {offsets = [2, 0], sizes = [1, 128], strides = [1, 1]} : vector<3x128xf32> to vector<1x128xf32>
    %615 = vector.extract_strided_slice %603 {offsets = [2, 0], sizes = [1, 128], strides = [1, 1]} : vector<3x128xf32> to vector<1x128xf32>
    %616 = arith.mulf %614, %615 : vector<1x128xf32>
    %617 = arith.addf %613, %616 : vector<1x128xf32>
    %618 = math.sqrt %617 : vector<1x128xf32>
    %619 = vector.extract_strided_slice %606 {offsets = [0, 0], sizes = [1, 128], strides = [1, 1]} : vector<3x128xf32> to vector<1x128xf32>
    %620 = vector.extract_strided_slice %606 {offsets = [0, 0], sizes = [1, 128], strides = [1, 1]} : vector<3x128xf32> to vector<1x128xf32>
    %621 = arith.mulf %619, %620 : vector<1x128xf32>
    %622 = vector.extract_strided_slice %606 {offsets = [1, 0], sizes = [1, 128], strides = [1, 1]} : vector<3x128xf32> to vector<1x128xf32>
    %623 = vector.extract_strided_slice %606 {offsets = [1, 0], sizes = [1, 128], strides = [1, 1]} : vector<3x128xf32> to vector<1x128xf32>
    %624 = arith.mulf %622, %623 : vector<1x128xf32>
    %625 = arith.addf %621, %624 : vector<1x128xf32>
    %626 = vector.extract_strided_slice %606 {offsets = [2, 0], sizes = [1, 128], strides = [1, 1]} : vector<3x128xf32> to vector<1x128xf32>
    %627 = vector.extract_strided_slice %606 {offsets = [2, 0], sizes = [1, 128], strides = [1, 1]} : vector<3x128xf32> to vector<1x128xf32>
    %628 = arith.mulf %626, %627 : vector<1x128xf32>
    %629 = arith.addf %625, %628 : vector<1x128xf32>
    %630 = math.sqrt %629 : vector<1x128xf32>
    %631 = arith.subf %618, %630 : vector<1x128xf32>
    %632 = arith.mulf %631, %631 : vector<1x128xf32>
    %633 = arith.addf %600, %632 : vector<1x128xf32>
    %634 = vector.extract_strided_slice %0 {offsets = [57, 0], sizes = [3, 128], strides = [1, 1]} : vector<63x128xf32> to vector<3x128xf32>
    %635 = vector.extract_strided_slice %0 {offsets = [60, 0], sizes = [3, 128], strides = [1, 1]} : vector<63x128xf32> to vector<3x128xf32>
    %636 = arith.subf %634, %635 : vector<3x128xf32>
    %637 = vector.extract_strided_slice %1 {offsets = [57, 0], sizes = [3, 128], strides = [1, 1]} : vector<63x128xf32> to vector<3x128xf32>
    %638 = vector.extract_strided_slice %1 {offsets = [60, 0], sizes = [3, 128], strides = [1, 1]} : vector<63x128xf32> to vector<3x128xf32>
    %639 = arith.subf %637, %638 : vector<3x128xf32>
    %640 = vector.extract_strided_slice %636 {offsets = [0, 0], sizes = [1, 128], strides = [1, 1]} : vector<3x128xf32> to vector<1x128xf32>
    %641 = vector.extract_strided_slice %636 {offsets = [0, 0], sizes = [1, 128], strides = [1, 1]} : vector<3x128xf32> to vector<1x128xf32>
    %642 = arith.mulf %640, %641 : vector<1x128xf32>
    %643 = vector.extract_strided_slice %636 {offsets = [1, 0], sizes = [1, 128], strides = [1, 1]} : vector<3x128xf32> to vector<1x128xf32>
    %644 = vector.extract_strided_slice %636 {offsets = [1, 0], sizes = [1, 128], strides = [1, 1]} : vector<3x128xf32> to vector<1x128xf32>
    %645 = arith.mulf %643, %644 : vector<1x128xf32>
    %646 = arith.addf %642, %645 : vector<1x128xf32>
    %647 = vector.extract_strided_slice %636 {offsets = [2, 0], sizes = [1, 128], strides = [1, 1]} : vector<3x128xf32> to vector<1x128xf32>
    %648 = vector.extract_strided_slice %636 {offsets = [2, 0], sizes = [1, 128], strides = [1, 1]} : vector<3x128xf32> to vector<1x128xf32>
    %649 = arith.mulf %647, %648 : vector<1x128xf32>
    %650 = arith.addf %646, %649 : vector<1x128xf32>
    %651 = math.sqrt %650 : vector<1x128xf32>
    %652 = vector.extract_strided_slice %639 {offsets = [0, 0], sizes = [1, 128], strides = [1, 1]} : vector<3x128xf32> to vector<1x128xf32>
    %653 = vector.extract_strided_slice %639 {offsets = [0, 0], sizes = [1, 128], strides = [1, 1]} : vector<3x128xf32> to vector<1x128xf32>
    %654 = arith.mulf %652, %653 : vector<1x128xf32>
    %655 = vector.extract_strided_slice %639 {offsets = [1, 0], sizes = [1, 128], strides = [1, 1]} : vector<3x128xf32> to vector<1x128xf32>
    %656 = vector.extract_strided_slice %639 {offsets = [1, 0], sizes = [1, 128], strides = [1, 1]} : vector<3x128xf32> to vector<1x128xf32>
    %657 = arith.mulf %655, %656 : vector<1x128xf32>
    %658 = arith.addf %654, %657 : vector<1x128xf32>
    %659 = vector.extract_strided_slice %639 {offsets = [2, 0], sizes = [1, 128], strides = [1, 1]} : vector<3x128xf32> to vector<1x128xf32>
    %660 = vector.extract_strided_slice %639 {offsets = [2, 0], sizes = [1, 128], strides = [1, 1]} : vector<3x128xf32> to vector<1x128xf32>
    %661 = arith.mulf %659, %660 : vector<1x128xf32>
    %662 = arith.addf %658, %661 : vector<1x128xf32>
    %663 = math.sqrt %662 : vector<1x128xf32>
    %664 = arith.subf %651, %663 : vector<1x128xf32>
    %665 = arith.mulf %664, %664 : vector<1x128xf32>
    %666 = arith.addf %633, %665 : vector<1x128xf32>
    %667 = vector.extract_strided_slice %0 {offsets = [27, 0], sizes = [3, 128], strides = [1, 1]} : vector<63x128xf32> to vector<3x128xf32>
    %668 = vector.extract_strided_slice %0 {offsets = [0, 0], sizes = [3, 128], strides = [1, 1]} : vector<63x128xf32> to vector<3x128xf32>
    %669 = arith.subf %667, %668 : vector<3x128xf32>
    %670 = vector.extract_strided_slice %1 {offsets = [27, 0], sizes = [3, 128], strides = [1, 1]} : vector<63x128xf32> to vector<3x128xf32>
    %671 = vector.extract_strided_slice %1 {offsets = [0, 0], sizes = [3, 128], strides = [1, 1]} : vector<63x128xf32> to vector<3x128xf32>
    %672 = arith.subf %670, %671 : vector<3x128xf32>
    %673 = vector.extract_strided_slice %669 {offsets = [0, 0], sizes = [1, 128], strides = [1, 1]} : vector<3x128xf32> to vector<1x128xf32>
    %674 = vector.extract_strided_slice %672 {offsets = [0, 0], sizes = [1, 128], strides = [1, 1]} : vector<3x128xf32> to vector<1x128xf32>
    %675 = arith.mulf %673, %674 : vector<1x128xf32>
    %676 = vector.extract_strided_slice %669 {offsets = [1, 0], sizes = [1, 128], strides = [1, 1]} : vector<3x128xf32> to vector<1x128xf32>
    %677 = vector.extract_strided_slice %672 {offsets = [1, 0], sizes = [1, 128], strides = [1, 1]} : vector<3x128xf32> to vector<1x128xf32>
    %678 = arith.mulf %676, %677 : vector<1x128xf32>
    %679 = arith.addf %675, %678 : vector<1x128xf32>
    %680 = vector.extract_strided_slice %669 {offsets = [2, 0], sizes = [1, 128], strides = [1, 1]} : vector<3x128xf32> to vector<1x128xf32>
    %681 = vector.extract_strided_slice %672 {offsets = [2, 0], sizes = [1, 128], strides = [1, 1]} : vector<3x128xf32> to vector<1x128xf32>
    %682 = arith.mulf %680, %681 : vector<1x128xf32>
    %683 = arith.addf %679, %682 : vector<1x128xf32>
    %684 = vector.extract_strided_slice %669 {offsets = [0, 0], sizes = [1, 128], strides = [1, 1]} : vector<3x128xf32> to vector<1x128xf32>
    %685 = vector.extract_strided_slice %669 {offsets = [0, 0], sizes = [1, 128], strides = [1, 1]} : vector<3x128xf32> to vector<1x128xf32>
    %686 = arith.mulf %684, %685 : vector<1x128xf32>
    %687 = vector.extract_strided_slice %669 {offsets = [1, 0], sizes = [1, 128], strides = [1, 1]} : vector<3x128xf32> to vector<1x128xf32>
    %688 = vector.extract_strided_slice %669 {offsets = [1, 0], sizes = [1, 128], strides = [1, 1]} : vector<3x128xf32> to vector<1x128xf32>
    %689 = arith.mulf %687, %688 : vector<1x128xf32>
    %690 = arith.addf %686, %689 : vector<1x128xf32>
    %691 = vector.extract_strided_slice %669 {offsets = [2, 0], sizes = [1, 128], strides = [1, 1]} : vector<3x128xf32> to vector<1x128xf32>
    %692 = vector.extract_strided_slice %669 {offsets = [2, 0], sizes = [1, 128], strides = [1, 1]} : vector<3x128xf32> to vector<1x128xf32>
    %693 = arith.mulf %691, %692 : vector<1x128xf32>
    %694 = arith.addf %690, %693 : vector<1x128xf32>
    %695 = math.rsqrt %694 : vector<1x128xf32>
    %696 = arith.mulf %683, %695 : vector<1x128xf32>
    %697 = vector.extract_strided_slice %672 {offsets = [0, 0], sizes = [1, 128], strides = [1, 1]} : vector<3x128xf32> to vector<1x128xf32>
    %698 = vector.extract_strided_slice %672 {offsets = [0, 0], sizes = [1, 128], strides = [1, 1]} : vector<3x128xf32> to vector<1x128xf32>
    %699 = arith.mulf %697, %698 : vector<1x128xf32>
    %700 = vector.extract_strided_slice %672 {offsets = [1, 0], sizes = [1, 128], strides = [1, 1]} : vector<3x128xf32> to vector<1x128xf32>
    %701 = vector.extract_strided_slice %672 {offsets = [1, 0], sizes = [1, 128], strides = [1, 1]} : vector<3x128xf32> to vector<1x128xf32>
    %702 = arith.mulf %700, %701 : vector<1x128xf32>
    %703 = arith.addf %699, %702 : vector<1x128xf32>
    %704 = vector.extract_strided_slice %672 {offsets = [2, 0], sizes = [1, 128], strides = [1, 1]} : vector<3x128xf32> to vector<1x128xf32>
    %705 = vector.extract_strided_slice %672 {offsets = [2, 0], sizes = [1, 128], strides = [1, 1]} : vector<3x128xf32> to vector<1x128xf32>
    %706 = arith.mulf %704, %705 : vector<1x128xf32>
    %707 = arith.addf %703, %706 : vector<1x128xf32>
    %708 = math.rsqrt %707 : vector<1x128xf32>
    %709 = arith.mulf %696, %708 : vector<1x128xf32>
    %cst_4 = arith.constant 1.000000e+00 : f32
    %710 = vector.broadcast %cst_4 : f32 to vector<1x128xf32>
    %711 = arith.subf %710, %709 : vector<1x128xf32>
    %712 = tpu.concatenate %5, %666, %711 in 0 : vector<1x128xf32>, vector<1x128xf32>, vector<1x128xf32> -> vector<3x128xf32>
    %c0_5 = arith.constant 0 : index
    %c0_6 = arith.constant 0 : index
    %713 = vector.load %arg2[%c0_5, %c0_6] : memref<3x128xf32, #tpu.memory_space<vmem>>, vector<3x128xf32>
    tpu.vector_store %arg2[%c0_5, %c0_6], %712 {strides = array<i32>} : memref<3x128xf32, #tpu.memory_space<vmem>>, vector<3x128xf32>,
    return
  }
}

</mosaic_0001>

<llo_original>
// kernel: tpu_custom_call.1
$region0: #{tpu_custom_call.1}
  #allocation0 [shape = 'u32[]', space=smem, size = 0x4, offset = 0x4, fixed_abs, tag = 'smem constant byte address 0x4 - core index']
  #allocation1 [shape = 'u32[72,128]{1,0:T(1,128)}', space=vmem, size = 0x9000, scoped, tag = 'internal scratch']
  %s0 = inlined_call_operand.hbm [shape: f32[63,128], index: 0, kind: input, shape index: {}]
  %s1 = inlined_call_operand.hbm [shape: f32[63,128], index: 1, kind: input, shape index: {}]
  %s2 = inlined_call_operand.hbm [shape: f32[3,128], index: 2, kind: output, shape index: {}]
  %s3 = sld [smem:[#allocation0]]
  $region26: #{tpu_custom_call.1} parent=0
    _
  %s5 = ssub.s32 1, %s3
  %s6 = scalar_select 0, %s5, %s3
  $region1: #{tpu_custom_call.1} parent=0
    #allocation2 [shape = 'u8[32768]{0}', space=vmem, size = 0x8000, scoped, tag = 'input window, operand 0, single buffered']
    #allocation3 [shape = 's32[1]{0}', space=sflag, size = 0x4, scoped, tag = 'scoped memory for tpu_custom_call.1']
    #allocation4 [shape = 's32[1]{0}', space=sflag, size = 0x4, scoped, tag = 'scoped memory for tpu_custom_call.1']
    #allocation5 [shape = 'u8[32768]{0}', space=vmem, size = 0x8000, scoped, tag = 'input window, operand 1, single buffered']
    #allocation6 [shape = 's32[1]{0}', space=sflag, size = 0x4, scoped, tag = 'scoped memory for tpu_custom_call.1']
    #allocation7 [shape = 'u8[2048]{0}', space=vmem, size = 0x800, scoped, tag = 'output window, operand 0, single buffered']
    %7 = vsyncpa [#allocation3], 0
    %8 = vsyncpa [#allocation6], 0
    %9 = vsyncpa [#allocation4], 0
    // Predicated region
    $region2: #{tpu_custom_call.1} parent=1 // pred_check
      _
    $region3: #{tpu_custom_call.1} parent=1 // pred_check_branch
      %11 = sbr.rel (0) target = $region5
    $region4: #{tpu_custom_call.1} parent=1 // pred_region
      %13 = vsyncadd [#allocation3], 0
      %s14 = sshll.u32 %s0, 4
      %s15 = int_to_ptr.hbm [resolvable:$true] %s14
      %s16 = sshll.u32 [#allocation2], 4
      %s17 = int_to_ptr.vmem [resolvable:$true] %s16
      %22 = dma.hbm_to_vmem [thread:$0]  %s15, 1024, %s17, [#allocation3], 128, 128, 8
    $region5: #{tpu_custom_call.1} parent=1 // pred_fallthru
      _
    // Predicated region
    $region6: #{tpu_custom_call.1} parent=1 // pred_check
      _
    $region7: #{tpu_custom_call.1} parent=1 // pred_check_branch
      %24 = sbr.rel (0) target = $region9
    $region8: #{tpu_custom_call.1} parent=1 // pred_region
      %26 = vsyncadd [#allocation6], 0
      %s27 = sshll.u32 %s1, 4
      %s28 = int_to_ptr.hbm [resolvable:$true] %s27
      %s29 = sshll.u32 [#allocation5], 4
      %s30 = int_to_ptr.vmem [resolvable:$true] %s29
      %35 = dma.hbm_to_vmem [thread:$0]  %s28, 1024, %s30, [#allocation6], 128, 128, 8
    $region9: #{tpu_custom_call.1} parent=1 // pred_fallthru
      _
    // Predicated region
    $region10: #{tpu_custom_call.1} parent=1 // pred_check
      _
    $region11: #{tpu_custom_call.1} parent=1 // pred_check_branch
      %37 = sbr.rel (0) target = $region13
    $region12: #{tpu_custom_call.1} parent=1 // pred_region
      %39 = dma.done [#allocation3], 1024
    $region13: #{tpu_custom_call.1} parent=1 // pred_fallthru
      _
    // Predicated region
    $region14: #{tpu_custom_call.1} parent=1 // pred_check
      _
    $region15: #{tpu_custom_call.1} parent=1 // pred_check_branch
      %41 = sbr.rel (0) target = $region17
    $region16: #{tpu_custom_call.1} parent=1 // pred_region
      %43 = dma.done [#allocation6], 1024
    $region17: #{tpu_custom_call.1} parent=1 // pred_fallthru
      _
    %v44 = vld [vmem:[#allocation2] sm:$0xff]
    %v45 = vld [vmem:[#allocation2 + $0x8] sm:$0xff]
    %v46 = vld [vmem:[#allocation2 + $0x10] sm:$0xff]
    %v47 = vld [vmem:[#allocation2 + $0x18] sm:$0xff]
    %v48 = vld [vmem:[#allocation2 + $0x20] sm:$0xff]
    %v49 = vld [vmem:[#allocation2 + $0x28] sm:$0xff]
    %v50 = vld [vmem:[#allocation2 + $0x30] sm:$0xff]
    %v51 = vld [vmem:[#allocation2 + $0x38] sm:$0x7f]
    %v52 = vld [vmem:[#allocation5] sm:$0xff]
    %v53 = vld [vmem:[#allocation5 + $0x8] sm:$0xff]
    %v54 = vld [vmem:[#allocation5 + $0x10] sm:$0xff]
    %v55 = vld [vmem:[#allocation5 + $0x18] sm:$0xff]
    %v56 = vld [vmem:[#allocation5 + $0x20] sm:$0xff]
    %v57 = vld [vmem:[#allocation5 + $0x28] sm:$0xff]
    %v58 = vld [vmem:[#allocation5 + $0x30] sm:$0xff]
    %v59 = vld [vmem:[#allocation5 + $0x38] sm:$0x7f]
    %v60 = vsub.f32 %v44, %v52
    %v61 = vsub.f32 %v45, %v53
    %v62 = vsub.f32 %v46, %v54
    %v63 = vsub.f32 %v47, %v55
    %v64 = vsub.f32 %v48, %v56
    %v65 = vsub.f32 %v49, %v57
    %v66 = vsub.f32 %v50, %v58
    %v67 = vsub.f32 %v51, %v59
    %v68 = vand.u32 2147483647, %v60
    %v69 = vand.u32 2147483647, %v61
    %v70 = vand.u32 2147483647, %v62
    %v71 = vand.u32 2147483647, %v63
    %v72 = vand.u32 2147483647, %v64
    %v73 = vand.u32 2147483647, %v65
    %v74 = vand.u32 2147483647, %v66
    %v75 = vand.u32 2147483647, %v67
    %v76 = vadd.f32 %v68, %v69
    %v77 = vadd.f32 %v76, %v70
    %v78 = vadd.f32 %v77, %v71
    %v79 = vadd.f32 %v78, %v72
    %v80 = vadd.f32 %v79, %v73
    %v81 = vadd.f32 %v80, %v74
    %vm82 = vcmask 1046528
    %v83 = vsel %vm82, %v75, 0.0
    %v84 = vadd.f32 %v81, %v83
    %v85 = vrot.slane %v84, 4
    %v86 = vadd.f32 %v84, %v85
    %v87 = vrot.slane %v86, 2
    %v88 = vadd.f32 %v86, %v87
    %v89 = vrot.slane %v88, 1
    %v90 = vadd.f32 %v88, %v89
    %v92 = vrot.slane %v44, 3
    %v94 = vsub.f32 %v44, %v92
    %v96 = vrot.slane %v52, 3
    %v98 = vsub.f32 %v52, %v96
    %v99 = vmul.f32 %v94, %v94
    %v101 = vrot.slane %v99, 1
    %v103 = vadd.f32 %v99, %v101
    %v104 = vrot.slane %v99, 2
    %v106 = vadd.f32 %v103, %v104
    %v107 = vrsqrt.pop %v106
    %v108 = vmul.f32 %v107, %v106
    %v109 = vmul.f32 %v108, %v107
    %v110 = vmul.f32 0.5, %v109
    %v111 = vsub.f32 1.5, %v110
    %v112 = vmul.f32 %v107, %v111
    %v113 = vmul.f32 %v106, %v112
    %vm114 = vcmp.eq.f32.partialorder %v106, inf
    %v115 = vsel %vm114, %v106, %v113
    %vm116 = vcmp.eq.f32.partialorder %v106, 0.0
    %v117 = vand.u32 %v106, 2147483648
    %v118 = vsel %vm116, %v117, %v115
    %v119 = vmul.f32 %v98, %v98
    %v121 = vrot.slane %v119, 1
    %v123 = vadd.f32 %v119, %v121
    %v124 = vrot.slane %v119, 2
    %v126 = vadd.f32 %v123, %v124
    %v127 = vrsqrt.pop %v126
    %v128 = vmul.f32 %v127, %v126
    %v129 = vmul.f32 %v128, %v127
    %v130 = vmul.f32 0.5, %v129
    %v131 = vsub.f32 1.5, %v130
    %v132 = vmul.f32 %v127, %v131
    %v133 = vmul.f32 %v126, %v132
    %vm134 = vcmp.eq.f32.partialorder %v126, inf
    %v135 = vsel %vm134, %v126, %v133
    %vm136 = vcmp.eq.f32.partialorder %v126, 0.0
    %v137 = vand.u32 %v126, 2147483648
    %v138 = vsel %vm136, %v137, %v135
    %v139 = vsub.f32 %v118, %v138
    %v140 = vmul.f32 %v139, %v139
    %v141 = vadd.f32 %v140, 0.0
    %vm143 = vcmask 1044480
    %v144 = vrot.slane %v45, 3
    %v145 = vsel %vm143, %v92, %v144
    %v147 = vsub.f32 %v44, %v145
    %v149 = vrot.slane %v53, 3
    %v150 = vsel %vm143, %v96, %v149
    %v152 = vsub.f32 %v52, %v150
    %v153 = vmul.f32 %v147, %v147
    %v155 = vrot.slane %v153, 1
    %v157 = vadd.f32 %v153, %v155
    %v158 = vrot.slane %v153, 2
    %v160 = vadd.f32 %v157, %v158
    %v161 = vrsqrt.pop %v160
    %v162 = vmul.f32 %v161, %v160
    %v163 = vmul.f32 %v162, %v161
    %v164 = vmul.f32 0.5, %v163
    %v165 = vsub.f32 1.5, %v164
    %v166 = vmul.f32 %v161, %v165
    %v167 = vmul.f32 %v160, %v166
    %vm168 = vcmp.eq.f32.partialorder %v160, inf
    %v169 = vsel %vm168, %v160, %v167
    %vm170 = vcmp.eq.f32.partialorder %v160, 0.0
    %v171 = vand.u32 %v160, 2147483648
    %v172 = vsel %vm170, %v171, %v169
    %v173 = vmul.f32 %v152, %v152
    %v175 = vrot.slane %v173, 1
    %v177 = vadd.f32 %v173, %v175
    %v178 = vrot.slane %v173, 2
    %v180 = vadd.f32 %v177, %v178
    %v181 = vrsqrt.pop %v180
    %v182 = vmul.f32 %v181, %v180
    %v183 = vmul.f32 %v182, %v181
    %v184 = vmul.f32 0.5, %v183
    %v185 = vsub.f32 1.5, %v184
    %v186 = vmul.f32 %v181, %v185
    %v187 = vmul.f32 %v180, %v186
    %vm188 = vcmp.eq.f32.partialorder %v180, inf
    %v189 = vsel %vm188, %v180, %v187
    %vm190 = vcmp.eq.f32.partialorder %v180, 0.0
    %v191 = vand.u32 %v180, 2147483648
    %v192 = vsel %vm190, %v191, %v189
    %v193 = vsub.f32 %v172, %v192
    %v194 = vmul.f32 %v193, %v193
    %v196 = vrot.slane %v194, 3
    %v198 = vadd.f32 %v141, %v196
    %v200 = vsub.f32 %v44, %v144
    %v201 = vsub.f32 %v45, %v144
    %v203 = vsub.f32 %v52, %v149
    %v204 = vsub.f32 %v53, %v149
    %v205 = vmul.f32 %v200, %v200
    %v207 = vrot.slane %v205, 1
    %v209 = vadd.f32 %v205, %v207
    %v210 = vmul.f32 %v201, %v201
    %v212 = vrot.slane %v210, 2
    %v214 = vadd.f32 %v209, %v212
    %v215 = vrsqrt.pop %v214
    %v216 = vmul.f32 %v215, %v214
    %v217 = vmul.f32 %v216, %v215
    %v218 = vmul.f32 0.5, %v217
    %v219 = vsub.f32 1.5, %v218
    %v220 = vmul.f32 %v215, %v219
    %v221 = vmul.f32 %v214, %v220
    %vm222 = vcmp.eq.f32.partialorder %v214, inf
    %v223 = vsel %vm222, %v214, %v221
    %vm224 = vcmp.eq.f32.partialorder %v214, 0.0
    %v225 = vand.u32 %v214, 2147483648
    %v226 = vsel %vm224, %v225, %v223
    %v227 = vmul.f32 %v203, %v203
    %v229 = vrot.slane %v227, 1
    %v231 = vadd.f32 %v227, %v229
    %v232 = vmul.f32 %v204, %v204
    %v234 = vrot.slane %v232, 2
    %v236 = vadd.f32 %v231, %v234
    %v237 = vrsqrt.pop %v236
    %v238 = vmul.f32 %v237, %v236
    %v239 = vmul.f32 %v238, %v237
    %v240 = vmul.f32 0.5, %v239
    %v241 = vsub.f32 1.5, %v240
    %v242 = vmul.f32 %v237, %v241
    %v243 = vmul.f32 %v236, %v242
    %vm244 = vcmp.eq.f32.partialorder %v236, inf
    %v245 = vsel %vm244, %v236, %v243
    %vm246 = vcmp.eq.f32.partialorder %v236, 0.0
    %v247 = vand.u32 %v236, 2147483648
    %v248 = vsel %vm246, %v247, %v245
    %v249 = vsub.f32 %v226, %v248
    %v250 = vmul.f32 %v249, %v249
    %v252 = vrot.slane %v250, 6
    %v254 = vadd.f32 %v198, %v252
    %v255 = vrot.slane %v210, 1
    %v257 = vadd.f32 %v210, %v255
    %v258 = vadd.f32 %v257, %v212
    %v259 = vrsqrt.pop %v258
    %v260 = vmul.f32 %v259, %v258
    %v261 = vmul.f32 %v260, %v259
    %v262 = vmul.f32 0.5, %v261
    %v263 = vsub.f32 1.5, %v262
    %v264 = vmul.f32 %v259, %v263
    %v265 = vmul.f32 %v258, %v264
    %vm266 = vcmp.eq.f32.partialorder %v258, inf
    %v267 = vsel %vm266, %v258, %v265
    %vm268 = vcmp.eq.f32.partialorder %v258, 0.0
    %v269 = vand.u32 %v258, 2147483648
    %v270 = vsel %vm268, %v269, %v267
    %v271 = vrot.slane %v232, 1
    %v273 = vadd.f32 %v232, %v271
    %v274 = vadd.f32 %v273, %v234
    %v275 = vrsqrt.pop %v274
    %v276 = vmul.f32 %v275, %v274
    %v277 = vmul.f32 %v276, %v275
    %v278 = vmul.f32 0.5, %v277
    %v279 = vsub.f32 1.5, %v278
    %v280 = vmul.f32 %v275, %v279
    %v281 = vmul.f32 %v274, %v280
    %vm282 = vcmp.eq.f32.partialorder %v274, inf
    %v283 = vsel %vm282, %v274, %v281
    %vm284 = vcmp.eq.f32.partialorder %v274, 0.0
    %v285 = vand.u32 %v274, 2147483648
    %v286 = vsel %vm284, %v285, %v283
    %v287 = vsub.f32 %v270, %v286
    %v288 = vmul.f32 %v287, %v287
    %v290 = vrot.slane %v288, 1
    %v292 = vadd.f32 %v254, %v290
    %vm294 = vcmask 1040384
    %v295 = vrot.slane %v45, 7
    %v296 = vrot.slane %v46, 7
    %v297 = vsel %vm294, %v295, %v296
    %v299 = vsub.f32 %v44, %v297
    %v301 = vrot.slane %v53, 7
    %v302 = vrot.slane %v54, 7
    %v303 = vsel %vm294, %v301, %v302
    %v305 = vsub.f32 %v52, %v303
    %v306 = vmul.f32 %v299, %v299
    %v308 = vrot.slane %v306, 1
    %v310 = vadd.f32 %v306, %v308
    %v311 = vrot.slane %v306, 2
    %v313 = vadd.f32 %v310, %v311
    %v314 = vrsqrt.pop %v313
    %v315 = vmul.f32 %v314, %v313
    %v316 = vmul.f32 %v315, %v314
    %v317 = vmul.f32 0.5, %v316
    %v318 = vsub.f32 1.5, %v317
    %v319 = vmul.f32 %v314, %v318
    %v320 = vmul.f32 %v313, %v319
    %vm321 = vcmp.eq.f32.partialorder %v313, inf
    %v322 = vsel %vm321, %v313, %v320
    %vm323 = vcmp.eq.f32.partialorder %v313, 0.0
    %v324 = vand.u32 %v313, 2147483648
    %v325 = vsel %vm323, %v324, %v322
    %v326 = vmul.f32 %v305, %v305
    %v328 = vrot.slane %v326, 1
    %v330 = vadd.f32 %v326, %v328
    %v331 = vrot.slane %v326, 2
    %v333 = vadd.f32 %v330, %v331
    %v334 = vrsqrt.pop %v333
    %v335 = vmul.f32 %v334, %v333
    %v336 = vmul.f32 %v335, %v334
    %v337 = vmul.f32 0.5, %v336
    %v338 = vsub.f32 1.5, %v337
    %v339 = vmul.f32 %v334, %v338
    %v340 = vmul.f32 %v333, %v339
    %vm341 = vcmp.eq.f32.partialorder %v333, inf
    %v342 = vsel %vm341, %v333, %v340
    %vm343 = vcmp.eq.f32.partialorder %v333, 0.0
    %v344 = vand.u32 %v333, 2147483648
    %v345 = vsel %vm343, %v344, %v342
    %v346 = vsub.f32 %v325, %v345
    %v347 = vmul.f32 %v346, %v346
    %v348 = vadd.f32 %v292, %v347
    %v349 = vrot.slane %v46, 3
    %v351 = vsub.f32 %v45, %v349
    %v352 = vsub.f32 %v46, %v349
    %v353 = vrot.slane %v54, 3
    %v355 = vsub.f32 %v53, %v353
    %v356 = vsub.f32 %v54, %v353
    %v357 = vmul.f32 %v351, %v351
    %v358 = vmul.f32 %v352, %v352
    %v360 = vrot.slane %v358, 1
    %v362 = vadd.f32 %v357, %v360
    %v363 = vrot.slane %v358, 2
    %v365 = vadd.f32 %v362, %v363
    %v366 = vrsqrt.pop %v365
    %v367 = vmul.f32 %v366, %v365
    %v368 = vmul.f32 %v367, %v366
    %v369 = vmul.f32 0.5, %v368
    %v370 = vsub.f32 1.5, %v369
    %v371 = vmul.f32 %v366, %v370
    %v372 = vmul.f32 %v365, %v371
    %vm373 = vcmp.eq.f32.partialorder %v365, inf
    %v374 = vsel %vm373, %v365, %v372
    %vm375 = vcmp.eq.f32.partialorder %v365, 0.0
    %v376 = vand.u32 %v365, 2147483648
    %v377 = vsel %vm375, %v376, %v374
    %v378 = vmul.f32 %v355, %v355
    %v379 = vmul.f32 %v356, %v356
    %v381 = vrot.slane %v379, 1
    %v383 = vadd.f32 %v378, %v381
    %v384 = vrot.slane %v379, 2
    %v386 = vadd.f32 %v383, %v384
    %v387 = vrsqrt.pop %v386
    %v388 = vmul.f32 %v387, %v386
    %v389 = vmul.f32 %v388, %v387
    %v390 = vmul.f32 0.5, %v389
    %v391 = vsub.f32 1.5, %v390
    %v392 = vmul.f32 %v387, %v391
    %v393 = vmul.f32 %v386, %v392
    %vm394 = vcmp.eq.f32.partialorder %v386, inf
    %v395 = vsel %vm394, %v386, %v393
    %vm396 = vcmp.eq.f32.partialorder %v386, 0.0
    %v397 = vand.u32 %v386, 2147483648
    %v398 = vsel %vm396, %v397, %v395
    %v399 = vsub.f32 %v377, %v398
    %v400 = vmul.f32 %v399, %v399
    %v402 = vrot.slane %v400, 7
    %v404 = vadd.f32 %v348, %v402
    %v405 = vadd.f32 %v358, %v360
    %v406 = vadd.f32 %v405, %v363
    %v407 = vrsqrt.pop %v406
    %v408 = vmul.f32 %v407, %v406
    %v409 = vmul.f32 %v408, %v407
    %v410 = vmul.f32 0.5, %v409
    %v411 = vsub.f32 1.5, %v410
    %v412 = vmul.f32 %v407, %v411
    %v413 = vmul.f32 %v406, %v412
    %vm414 = vcmp.eq.f32.partialorder %v406, inf
    %v415 = vsel %vm414, %v406, %v413
    %vm416 = vcmp.eq.f32.partialorder %v406, 0.0
    %v417 = vand.u32 %v406, 2147483648
    %v418 = vsel %vm416, %v417, %v415
    %v419 = vadd.f32 %v379, %v381
    %v420 = vadd.f32 %v419, %v384
    %v421 = vrsqrt.pop %v420
    %v422 = vmul.f32 %v421, %v420
    %v423 = vmul.f32 %v422, %v421
    %v424 = vmul.f32 0.5, %v423
    %v425 = vsub.f32 1.5, %v424
    %v426 = vmul.f32 %v421, %v425
    %v427 = vmul.f32 %v420, %v426
    %vm428 = vcmp.eq.f32.partialorder %v420, inf
    %v429 = vsel %vm428, %v420, %v427
    %vm430 = vcmp.eq.f32.partialorder %v420, 0.0
    %v431 = vand.u32 %v420, 2147483648
    %v432 = vsel %vm430, %v431, %v429
    %v433 = vsub.f32 %v418, %v432
    %v434 = vmul.f32 %v433, %v433
    %v436 = vrot.slane %v434, 2
    %v438 = vadd.f32 %v404, %v436
    %v440 = vrot.slane %v47, 3
    %v442 = vsub.f32 %v46, %v440
    %v444 = vrot.slane %v55, 3
    %v446 = vsub.f32 %v54, %v444
    %v447 = vmul.f32 %v442, %v442
    %v449 = vrot.slane %v447, 1
    %v451 = vadd.f32 %v447, %v449
    %v452 = vrot.slane %v447, 2
    %v454 = vadd.f32 %v451, %v452
    %v455 = vrsqrt.pop %v454
    %v456 = vmul.f32 %v455, %v454
    %v457 = vmul.f32 %v456, %v455
    %v458 = vmul.f32 0.5, %v457
    %v459 = vsub.f32 1.5, %v458
    %v460 = vmul.f32 %v455, %v459
    %v461 = vmul.f32 %v454, %v460
    %vm462 = vcmp.eq.f32.partialorder %v454, inf
    %v463 = vsel %vm462, %v454, %v461
    %vm464 = vcmp.eq.f32.partialorder %v454, 0.0
    %v465 = vand.u32 %v454, 2147483648
    %v466 = vsel %vm464, %v465, %v463
    %v467 = vmul.f32 %v446, %v446
    %v469 = vrot.slane %v467, 1
    %v471 = vadd.f32 %v467, %v469
    %v472 = vrot.slane %v467, 2
    %v474 = vadd.f32 %v471, %v472
    %v475 = vrsqrt.pop %v474
    %v476 = vmul.f32 %v475, %v474
    %v477 = vmul.f32 %v476, %v475
    %v478 = vmul.f32 0.5, %v477
    %v479 = vsub.f32 1.5, %v478
    %v480 = vmul.f32 %v475, %v479
    %v481 = vmul.f32 %v474, %v480
    %vm482 = vcmp.eq.f32.partialorder %v474, inf
    %v483 = vsel %vm482, %v474, %v481
    %vm484 = vcmp.eq.f32.partialorder %v474, 0.0
    %v485 = vand.u32 %v474, 2147483648
    %v486 = vsel %vm484, %v485, %v483
    %v487 = vsub.f32 %v466, %v486
    %v488 = vmul.f32 %v487, %v487
    %v490 = vrot.slane %v488, 5
    %v492 = vadd.f32 %v438, %v490
    %v493 = vsub.f32 %v44, %v440
    %v494 = vsub.f32 %v52, %v444
    %v495 = vmul.f32 %v493, %v493
    %v497 = vrot.slane %v495, 1
    %v499 = vadd.f32 %v495, %v497
    %v500 = vrot.slane %v495, 2
    %v502 = vadd.f32 %v499, %v500
    %v503 = vrsqrt.pop %v502
    %v504 = vmul.f32 %v503, %v502
    %v505 = vmul.f32 %v504, %v503
    %v506 = vmul.f32 0.5, %v505
    %v507 = vsub.f32 1.5, %v506
    %v508 = vmul.f32 %v503, %v507
    %v509 = vmul.f32 %v502, %v508
    %vm510 = vcmp.eq.f32.partialorder %v502, inf
    %v511 = vsel %vm510, %v502, %v509
    %vm512 = vcmp.eq.f32.partialorder %v502, 0.0
    %v513 = vand.u32 %v502, 2147483648
    %v514 = vsel %vm512, %v513, %v511
    %v515 = vmul.f32 %v494, %v494
    %v517 = vrot.slane %v515, 1
    %v519 = vadd.f32 %v515, %v517
    %v520 = vrot.slane %v515, 2
    %v522 = vadd.f32 %v519, %v520
    %v523 = vrsqrt.pop %v522
    %v524 = vmul.f32 %v523, %v522
    %v525 = vmul.f32 %v524, %v523
    %v526 = vmul.f32 0.5, %v525
    %v527 = vsub.f32 1.5, %v526
    %v528 = vmul.f32 %v523, %v527
    %v529 = vmul.f32 %v522, %v528
    %vm530 = vcmp.eq.f32.partialorder %v522, inf
    %v531 = vsel %vm530, %v522, %v529
    %vm532 = vcmp.eq.f32.partialorder %v522, 0.0
    %v533 = vand.u32 %v522, 2147483648
    %v534 = vsel %vm532, %v533, %v531
    %v535 = vsub.f32 %v514, %v534
    %v536 = vmul.f32 %v535, %v535
    %v537 = vadd.f32 %v492, %v536
    %v539 = vrot.slane %v48, 3
    %v540 = vsel %vm143, %v440, %v539
    %v542 = vsub.f32 %v47, %v540
    %v544 = vrot.slane %v56, 3
    %v545 = vsel %vm143, %v444, %v544
    %v547 = vsub.f32 %v55, %v545
    %v548 = vmul.f32 %v542, %v542
    %v550 = vrot.slane %v548, 1
    %v552 = vadd.f32 %v548, %v550
    %v553 = vrot.slane %v548, 2
    %v555 = vadd.f32 %v552, %v553
    %v556 = vrsqrt.pop %v555
    %v557 = vmul.f32 %v556, %v555
    %v558 = vmul.f32 %v557, %v556
    %v559 = vmul.f32 0.5, %v558
    %v560 = vsub.f32 1.5, %v559
    %v561 = vmul.f32 %v556, %v560
    %v562 = vmul.f32 %v555, %v561
    %vm563 = vcmp.eq.f32.partialorder %v555, inf
    %v564 = vsel %vm563, %v555, %v562
    %vm565 = vcmp.eq.f32.partialorder %v555, 0.0
    %v566 = vand.u32 %v555, 2147483648
    %v567 = vsel %vm565, %v566, %v564
    %v568 = vmul.f32 %v547, %v547
    %v570 = vrot.slane %v568, 1
    %v572 = vadd.f32 %v568, %v570
    %v573 = vrot.slane %v568, 2
    %v575 = vadd.f32 %v572, %v573
    %v576 = vrsqrt.pop %v575
    %v577 = vmul.f32 %v576, %v575
    %v578 = vmul.f32 %v577, %v576
    %v579 = vmul.f32 0.5, %v578
    %v580 = vsub.f32 1.5, %v579
    %v581 = vmul.f32 %v576, %v580
    %v582 = vmul.f32 %v575, %v581
    %vm583 = vcmp.eq.f32.partialorder %v575, inf
    %v584 = vsel %vm583, %v575, %v582
    %vm585 = vcmp.eq.f32.partialorder %v575, 0.0
    %v586 = vand.u32 %v575, 2147483648
    %v587 = vsel %vm585, %v586, %v584
    %v588 = vsub.f32 %v567, %v587
    %v589 = vmul.f32 %v588, %v588
    %v591 = vrot.slane %v589, 3
    %v593 = vadd.f32 %v537, %v591
    %v595 = vsub.f32 %v47, %v539
    %v596 = vsub.f32 %v48, %v539
    %v598 = vsub.f32 %v55, %v544
    %v599 = vsub.f32 %v56, %v544
    %v600 = vmul.f32 %v595, %v595
    %v602 = vrot.slane %v600, 1
    %v604 = vadd.f32 %v600, %v602
    %v605 = vmul.f32 %v596, %v596
    %v607 = vrot.slane %v605, 2
    %v609 = vadd.f32 %v604, %v607
    %v610 = vrsqrt.pop %v609
    %v611 = vmul.f32 %v610, %v609
    %v612 = vmul.f32 %v611, %v610
    %v613 = vmul.f32 0.5, %v612
    %v614 = vsub.f32 1.5, %v613
    %v615 = vmul.f32 %v610, %v614
    %v616 = vmul.f32 %v609, %v615
    %vm617 = vcmp.eq.f32.partialorder %v609, inf
    %v618 = vsel %vm617, %v609, %v616
    %vm619 = vcmp.eq.f32.partialorder %v609, 0.0
    %v620 = vand.u32 %v609, 2147483648
    %v621 = vsel %vm619, %v620, %v618
    %v622 = vmul.f32 %v598, %v598
    %v624 = vrot.slane %v622, 1
    %v626 = vadd.f32 %v622, %v624
    %v627 = vmul.f32 %v599, %v599
    %v629 = vrot.slane %v627, 2
    %v631 = vadd.f32 %v626, %v629
    %v632 = vrsqrt.pop %v631
    %v633 = vmul.f32 %v632, %v631
    %v634 = vmul.f32 %v633, %v632
    %v635 = vmul.f32 0.5, %v634
    %v636 = vsub.f32 1.5, %v635
    %v637 = vmul.f32 %v632, %v636
    %v638 = vmul.f32 %v631, %v637
    %vm639 = vcmp.eq.f32.partialorder %v631, inf
    %v640 = vsel %vm639, %v631, %v638
    %vm641 = vcmp.eq.f32.partialorder %v631, 0.0
    %v642 = vand.u32 %v631, 2147483648
    %v643 = vsel %vm641, %v642, %v640
    %v644 = vsub.f32 %v621, %v643
    %v645 = vmul.f32 %v644, %v644
    %v647 = vrot.slane %v645, 6
    %v649 = vadd.f32 %v593, %v647
    %v650 = vrot.slane %v605, 1
    %v652 = vadd.f32 %v605, %v650
    %v653 = vadd.f32 %v652, %v607
    %v654 = vrsqrt.pop %v653
    %v655 = vmul.f32 %v654, %v653
    %v656 = vmul.f32 %v655, %v654
    %v657 = vmul.f32 0.5, %v656
    %v658 = vsub.f32 1.5, %v657
    %v659 = vmul.f32 %v654, %v658
    %v660 = vmul.f32 %v653, %v659
    %vm661 = vcmp.eq.f32.partialorder %v653, inf
    %v662 = vsel %vm661, %v653, %v660
    %vm663 = vcmp.eq.f32.partialorder %v653, 0.0
    %v664 = vand.u32 %v653, 2147483648
    %v665 = vsel %vm663, %v664, %v662
    %v666 = vrot.slane %v627, 1
    %v668 = vadd.f32 %v627, %v666
    %v669 = vadd.f32 %v668, %v629
    %v670 = vrsqrt.pop %v669
    %v671 = vmul.f32 %v670, %v669
    %v672 = vmul.f32 %v671, %v670
    %v673 = vmul.f32 0.5, %v672
    %v674 = vsub.f32 1.5, %v673
    %v675 = vmul.f32 %v670, %v674
    %v676 = vmul.f32 %v669, %v675
    %vm677 = vcmp.eq.f32.partialorder %v669, inf
    %v678 = vsel %vm677, %v669, %v676
    %vm679 = vcmp.eq.f32.partialorder %v669, 0.0
    %v680 = vand.u32 %v669, 2147483648
    %v681 = vsel %vm679, %v680, %v678
    %v682 = vsub.f32 %v665, %v681
    %v683 = vmul.f32 %v682, %v682
    %v685 = vrot.slane %v683, 1
    %v687 = vadd.f32 %v649, %v685
    %v689 = vrot.slane %v48, 7
    %v690 = vrot.slane %v49, 7
    %v691 = vsel %vm294, %v689, %v690
    %v693 = vsub.f32 %v44, %v691
    %v695 = vrot.slane %v56, 7
    %v696 = vrot.slane %v57, 7
    %v697 = vsel %vm294, %v695, %v696
    %v699 = vsub.f32 %v52, %v697
    %v700 = vmul.f32 %v693, %v693
    %v702 = vrot.slane %v700, 1
    %v704 = vadd.f32 %v700, %v702
    %v705 = vrot.slane %v700, 2
    %v707 = vadd.f32 %v704, %v705
    %v708 = vrsqrt.pop %v707
    %v709 = vmul.f32 %v708, %v707
    %v710 = vmul.f32 %v709, %v708
    %v711 = vmul.f32 0.5, %v710
    %v712 = vsub.f32 1.5, %v711
    %v713 = vmul.f32 %v708, %v712
    %v714 = vmul.f32 %v707, %v713
    %vm715 = vcmp.eq.f32.partialorder %v707, inf
    %v716 = vsel %vm715, %v707, %v714
    %vm717 = vcmp.eq.f32.partialorder %v707, 0.0
    %v718 = vand.u32 %v707, 2147483648
    %v719 = vsel %vm717, %v718, %v716
    %v720 = vmul.f32 %v699, %v699
    %v722 = vrot.slane %v720, 1
    %v724 = vadd.f32 %v720, %v722
    %v725 = vrot.slane %v720, 2
    %v727 = vadd.f32 %v724, %v725
    %v728 = vrsqrt.pop %v727
    %v729 = vmul.f32 %v728, %v727
    %v730 = vmul.f32 %v729, %v728
    %v731 = vmul.f32 0.5, %v730
    %v732 = vsub.f32 1.5, %v731
    %v733 = vmul.f32 %v728, %v732
    %v734 = vmul.f32 %v727, %v733
    %vm735 = vcmp.eq.f32.partialorder %v727, inf
    %v736 = vsel %vm735, %v727, %v734
    %vm737 = vcmp.eq.f32.partialorder %v727, 0.0
    %v738 = vand.u32 %v727, 2147483648
    %v739 = vsel %vm737, %v738, %v736
    %v740 = vsub.f32 %v719, %v739
    %v741 = vmul.f32 %v740, %v740
    %v742 = vadd.f32 %v687, %v741
    %v743 = vrot.slane %v49, 3
    %v745 = vsub.f32 %v48, %v743
    %v746 = vsub.f32 %v49, %v743
    %v747 = vrot.slane %v57, 3
    %v749 = vsub.f32 %v56, %v747
    %v750 = vsub.f32 %v57, %v747
    %v751 = vmul.f32 %v745, %v745
    %v752 = vmul.f32 %v746, %v746
    %v754 = vrot.slane %v752, 1
    %v756 = vadd.f32 %v751, %v754
    %v757 = vrot.slane %v752, 2
    %v759 = vadd.f32 %v756, %v757
    %v760 = vrsqrt.pop %v759
    %v761 = vmul.f32 %v760, %v759
    %v762 = vmul.f32 %v761, %v760
    %v763 = vmul.f32 0.5, %v762
    %v764 = vsub.f32 1.5, %v763
    %v765 = vmul.f32 %v760, %v764
    %v766 = vmul.f32 %v759, %v765
    %vm767 = vcmp.eq.f32.partialorder %v759, inf
    %v768 = vsel %vm767, %v759, %v766
    %vm769 = vcmp.eq.f32.partialorder %v759, 0.0
    %v770 = vand.u32 %v759, 2147483648
    %v771 = vsel %vm769, %v770, %v768
    %v772 = vmul.f32 %v749, %v749
    %v773 = vmul.f32 %v750, %v750
    %v775 = vrot.slane %v773, 1
    %v777 = vadd.f32 %v772, %v775
    %v778 = vrot.slane %v773, 2
    %v780 = vadd.f32 %v777, %v778
    %v781 = vrsqrt.pop %v780
    %v782 = vmul.f32 %v781, %v780
    %v783 = vmul.f32 %v782, %v781
    %v784 = vmul.f32 0.5, %v783
    %v785 = vsub.f32 1.5, %v784
    %v786 = vmul.f32 %v781, %v785
    %v787 = vmul.f32 %v780, %v786
    %vm788 = vcmp.eq.f32.partialorder %v780, inf
    %v789 = vsel %vm788, %v780, %v787
    %vm790 = vcmp.eq.f32.partialorder %v780, 0.0
    %v791 = vand.u32 %v780, 2147483648
    %v792 = vsel %vm790, %v791, %v789
    %v793 = vsub.f32 %v771, %v792
    %v794 = vmul.f32 %v793, %v793
    %v796 = vrot.slane %v794, 7
    %v798 = vadd.f32 %v742, %v796
    %v799 = vadd.f32 %v752, %v754
    %v800 = vadd.f32 %v799, %v757
    %v801 = vrsqrt.pop %v800
    %v802 = vmul.f32 %v801, %v800
    %v803 = vmul.f32 %v802, %v801
    %v804 = vmul.f32 0.5, %v803
    %v805 = vsub.f32 1.5, %v804
    %v806 = vmul.f32 %v801, %v805
    %v807 = vmul.f32 %v800, %v806
    %vm808 = vcmp.eq.f32.partialorder %v800, inf
    %v809 = vsel %vm808, %v800, %v807
    %vm810 = vcmp.eq.f32.partialorder %v800, 0.0
    %v811 = vand.u32 %v800, 2147483648
    %v812 = vsel %vm810, %v811, %v809
    %v813 = vadd.f32 %v773, %v775
    %v814 = vadd.f32 %v813, %v778
    %v815 = vrsqrt.pop %v814
    %v816 = vmul.f32 %v815, %v814
    %v817 = vmul.f32 %v816, %v815
    %v818 = vmul.f32 0.5, %v817
    %v819 = vsub.f32 1.5, %v818
    %v820 = vmul.f32 %v815, %v819
    %v821 = vmul.f32 %v814, %v820
    %vm822 = vcmp.eq.f32.partialorder %v814, inf
    %v823 = vsel %vm822, %v814, %v821
    %vm824 = vcmp.eq.f32.partialorder %v814, 0.0
    %v825 = vand.u32 %v814, 2147483648
    %v826 = vsel %vm824, %v825, %v823
    %v827 = vsub.f32 %v812, %v826
    %v828 = vmul.f32 %v827, %v827
    %v830 = vrot.slane %v828, 2
    %v832 = vadd.f32 %v798, %v830
    %v834 = vrot.slane %v50, 3
    %v836 = vsub.f32 %v49, %v834
    %v838 = vrot.slane %v58, 3
    %v840 = vsub.f32 %v57, %v838
    %v841 = vmul.f32 %v836, %v836
    %v843 = vrot.slane %v841, 1
    %v845 = vadd.f32 %v841, %v843
    %v846 = vrot.slane %v841, 2
    %v848 = vadd.f32 %v845, %v846
    %v849 = vrsqrt.pop %v848
    %v850 = vmul.f32 %v849, %v848
    %v851 = vmul.f32 %v850, %v849
    %v852 = vmul.f32 0.5, %v851
    %v853 = vsub.f32 1.5, %v852
    %v854 = vmul.f32 %v849, %v853
    %v855 = vmul.f32 %v848, %v854
    %vm856 = vcmp.eq.f32.partialorder %v848, inf
    %v857 = vsel %vm856, %v848, %v855
    %vm858 = vcmp.eq.f32.partialorder %v848, 0.0
    %v859 = vand.u32 %v848, 2147483648
    %v860 = vsel %vm858, %v859, %v857
    %v861 = vmul.f32 %v840, %v840
    %v863 = vrot.slane %v861, 1
    %v865 = vadd.f32 %v861, %v863
    %v866 = vrot.slane %v861, 2
    %v868 = vadd.f32 %v865, %v866
    %v869 = vrsqrt.pop %v868
    %v870 = vmul.f32 %v869, %v868
    %v871 = vmul.f32 %v870, %v869
    %v872 = vmul.f32 0.5, %v871
    %v873 = vsub.f32 1.5, %v872
    %v874 = vmul.f32 %v869, %v873
    %v875 = vmul.f32 %v868, %v874
    %vm876 = vcmp.eq.f32.partialorder %v868, inf
    %v877 = vsel %vm876, %v868, %v875
    %vm878 = vcmp.eq.f32.partialorder %v868, 0.0
    %v879 = vand.u32 %v868, 2147483648
    %v880 = vsel %vm878, %v879, %v877
    %v881 = vsub.f32 %v860, %v880
    %v882 = vmul.f32 %v881, %v881
    %v884 = vrot.slane %v882, 5
    %v886 = vadd.f32 %v832, %v884
    %v887 = vsub.f32 %v44, %v834
    %v888 = vsub.f32 %v52, %v838
    %v889 = vmul.f32 %v887, %v887
    %v891 = vrot.slane %v889, 1
    %v893 = vadd.f32 %v889, %v891
    %v894 = vrot.slane %v889, 2
    %v896 = vadd.f32 %v893, %v894
    %v897 = vrsqrt.pop %v896
    %v898 = vmul.f32 %v897, %v896
    %v899 = vmul.f32 %v898, %v897
    %v900 = vmul.f32 0.5, %v899
    %v901 = vsub.f32 1.5, %v900
    %v902 = vmul.f32 %v897, %v901
    %v903 = vmul.f32 %v896, %v902
    %vm904 = vcmp.eq.f32.partialorder %v896, inf
    %v905 = vsel %vm904, %v896, %v903
    %vm906 = vcmp.eq.f32.partialorder %v896, 0.0
    %v907 = vand.u32 %v896, 2147483648
    %v908 = vsel %vm906, %v907, %v905
    %v909 = vmul.f32 %v888, %v888
    %v911 = vrot.slane %v909, 1
    %v913 = vadd.f32 %v909, %v911
    %v914 = vrot.slane %v909, 2
    %v916 = vadd.f32 %v913, %v914
    %v917 = vrsqrt.pop %v916
    %v918 = vmul.f32 %v917, %v916
    %v919 = vmul.f32 %v918, %v917
    %v920 = vmul.f32 0.5, %v919
    %v921 = vsub.f32 1.5, %v920
    %v922 = vmul.f32 %v917, %v921
    %v923 = vmul.f32 %v916, %v922
    %vm924 = vcmp.eq.f32.partialorder %v916, inf
    %v925 = vsel %vm924, %v916, %v923
    %vm926 = vcmp.eq.f32.partialorder %v916, 0.0
    %v927 = vand.u32 %v916, 2147483648
    %v928 = vsel %vm926, %v927, %v925
    %v929 = vsub.f32 %v908, %v928
    %v930 = vmul.f32 %v929, %v929
    %v931 = vadd.f32 %v886, %v930
    %v933 = vrot.slane %v51, 3
    %v934 = vsel %vm143, %v834, %v933
    %v936 = vsub.f32 %v50, %v934
    %v938 = vrot.slane %v59, 3
    %v939 = vsel %vm143, %v838, %v938
    %v941 = vsub.f32 %v58, %v939
    %v942 = vmul.f32 %v936, %v936
    %v944 = vrot.slane %v942, 1
    %v946 = vadd.f32 %v942, %v944
    %v947 = vrot.slane %v942, 2
    %v949 = vadd.f32 %v946, %v947
    %v950 = vrsqrt.pop %v949
    %v951 = vmul.f32 %v950, %v949
    %v952 = vmul.f32 %v951, %v950
    %v953 = vmul.f32 0.5, %v952
    %v954 = vsub.f32 1.5, %v953
    %v955 = vmul.f32 %v950, %v954
    %v956 = vmul.f32 %v949, %v955
    %vm957 = vcmp.eq.f32.partialorder %v949, inf
    %v958 = vsel %vm957, %v949, %v956
    %vm959 = vcmp.eq.f32.partialorder %v949, 0.0
    %v960 = vand.u32 %v949, 2147483648
    %v961 = vsel %vm959, %v960, %v958
    %v962 = vmul.f32 %v941, %v941
    %v964 = vrot.slane %v962, 1
    %v966 = vadd.f32 %v962, %v964
    %v967 = vrot.slane %v962, 2
    %v969 = vadd.f32 %v966, %v967
    %v970 = vrsqrt.pop %v969
    %v971 = vmul.f32 %v970, %v969
    %v972 = vmul.f32 %v971, %v970
    %v973 = vmul.f32 0.5, %v972
    %v974 = vsub.f32 1.5, %v973
    %v975 = vmul.f32 %v970, %v974
    %v976 = vmul.f32 %v969, %v975
    %vm977 = vcmp.eq.f32.partialorder %v969, inf
    %v978 = vsel %vm977, %v969, %v976
    %vm979 = vcmp.eq.f32.partialorder %v969, 0.0
    %v980 = vand.u32 %v969, 2147483648
    %v981 = vsel %vm979, %v980, %v978
    %v982 = vsub.f32 %v961, %v981
    %v983 = vmul.f32 %v982, %v982
    %v985 = vrot.slane %v983, 3
    %v987 = vadd.f32 %v931, %v985
    %v989 = vsub.f32 %v50, %v933
    %v990 = vsub.f32 %v51, %v933
    %v992 = vsub.f32 %v58, %v938
    %v993 = vsub.f32 %v59, %v938
    %v994 = vmul.f32 %v989, %v989
    %v996 = vrot.slane %v994, 1
    %v998 = vadd.f32 %v994, %v996
    %v999 = vmul.f32 %v990, %v990
    %v1001 = vrot.slane %v999, 2
    %v1003 = vadd.f32 %v998, %v1001
    %v1004 = vrsqrt.pop %v1003
    %v1005 = vmul.f32 %v1004, %v1003
    %v1006 = vmul.f32 %v1005, %v1004
    %v1007 = vmul.f32 0.5, %v1006
    %v1008 = vsub.f32 1.5, %v1007
    %v1009 = vmul.f32 %v1004, %v1008
    %v1010 = vmul.f32 %v1003, %v1009
    %vm1011 = vcmp.eq.f32.partialorder %v1003, inf
    %v1012 = vsel %vm1011, %v1003, %v1010
    %vm1013 = vcmp.eq.f32.partialorder %v1003, 0.0
    %v1014 = vand.u32 %v1003, 2147483648
    %v1015 = vsel %vm1013, %v1014, %v1012
    %v1016 = vmul.f32 %v992, %v992
    %v1018 = vrot.slane %v1016, 1
    %v1020 = vadd.f32 %v1016, %v1018
    %v1021 = vmul.f32 %v993, %v993
    %v1023 = vrot.slane %v1021, 2
    %v1025 = vadd.f32 %v1020, %v1023
    %v1026 = vrsqrt.pop %v1025
    %v1027 = vmul.f32 %v1026, %v1025
    %v1028 = vmul.f32 %v1027, %v1026
    %v1029 = vmul.f32 0.5, %v1028
    %v1030 = vsub.f32 1.5, %v1029
    %v1031 = vmul.f32 %v1026, %v1030
    %v1032 = vmul.f32 %v1025, %v1031
    %vm1033 = vcmp.eq.f32.partialorder %v1025, inf
    %v1034 = vsel %vm1033, %v1025, %v1032
    %vm1035 = vcmp.eq.f32.partialorder %v1025, 0.0
    %v1036 = vand.u32 %v1025, 2147483648
    %v1037 = vsel %vm1035, %v1036, %v1034
    %v1038 = vsub.f32 %v1015, %v1037
    %v1039 = vmul.f32 %v1038, %v1038
    %v1041 = vrot.slane %v1039, 6
    %v1043 = vadd.f32 %v987, %v1041
    %v1044 = vrot.slane %v999, 1
    %v1046 = vadd.f32 %v999, %v1044
    %v1047 = vadd.f32 %v1046, %v1001
    %v1048 = vrsqrt.pop %v1047
    %v1049 = vmul.f32 %v1048, %v1047
    %v1050 = vmul.f32 %v1049, %v1048
    %v1051 = vmul.f32 0.5, %v1050
    %v1052 = vsub.f32 1.5, %v1051
    %v1053 = vmul.f32 %v1048, %v1052
    %v1054 = vmul.f32 %v1047, %v1053
    %vm1055 = vcmp.eq.f32.partialorder %v1047, inf
    %v1056 = vsel %vm1055, %v1047, %v1054
    %vm1057 = vcmp.eq.f32.partialorder %v1047, 0.0
    %v1058 = vand.u32 %v1047, 2147483648
    %v1059 = vsel %vm1057, %v1058, %v1056
    %v1060 = vrot.slane %v1021, 1
    %v1062 = vadd.f32 %v1021, %v1060
    %v1063 = vadd.f32 %v1062, %v1023
    %v1064 = vrsqrt.pop %v1063
    %v1065 = vmul.f32 %v1064, %v1063
    %v1066 = vmul.f32 %v1065, %v1064
    %v1067 = vmul.f32 0.5, %v1066
    %v1068 = vsub.f32 1.5, %v1067
    %v1069 = vmul.f32 %v1064, %v1068
    %v1070 = vmul.f32 %v1063, %v1069
    %vm1071 = vcmp.eq.f32.partialorder %v1063, inf
    %v1072 = vsel %vm1071, %v1063, %v1070
    %vm1073 = vcmp.eq.f32.partialorder %v1063, 0.0
    %v1074 = vand.u32 %v1063, 2147483648
    %v1075 = vsel %vm1073, %v1074, %v1072
    %v1076 = vsub.f32 %v1059, %v1075
    %v1077 = vmul.f32 %v1076, %v1076
    %v1079 = vrot.slane %v1077, 1
    %v1081 = vadd.f32 %v1043, %v1079
    %v1082 = vrot.slane %v44, 5
    %v1084 = vsub.f32 %v47, %v1082
    %v1085 = vrot.slane %v52, 5
    %v1087 = vsub.f32 %v55, %v1085
    %v1088 = vmul.f32 %v1084, %v1087
    %v1090 = vrot.slane %v1088, 1
    %v1092 = vadd.f32 %v1088, %v1090
    %v1093 = vrot.slane %v1088, 2
    %v1095 = vadd.f32 %v1092, %v1093
    %v1096 = vmul.f32 %v1084, %v1084
    %v1098 = vrot.slane %v1096, 1
    %v1100 = vadd.f32 %v1096, %v1098
    %v1101 = vrot.slane %v1096, 2
    %v1103 = vadd.f32 %v1100, %v1101
    %v1104 = vrsqrt.pop %v1103
    %v1105 = vmul.f32 %v1104, %v1103
    %v1106 = vmul.f32 %v1105, %v1104
    %v1107 = vmul.f32 0.5, %v1106
    %v1108 = vsub.f32 1.5, %v1107
    %v1109 = vmul.f32 %v1104, %v1108
    %vm1110 = vweird.f32 %v1103
    %vm1111 = vweird.f32 %v1104
    %vm1112 = vmor %vm1110, %vm1111
    %v1113 = vsel %vm1112, %v1104, %v1109
    %v1114 = vmul.f32 %v1095, %v1113
    %v1115 = vmul.f32 %v1087, %v1087
    %v1117 = vrot.slane %v1115, 1
    %v1119 = vadd.f32 %v1115, %v1117
    %v1120 = vrot.slane %v1115, 2
    %v1122 = vadd.f32 %v1119, %v1120
    %v1123 = vrsqrt.pop %v1122
    %v1124 = vmul.f32 %v1123, %v1122
    %v1125 = vmul.f32 %v1124, %v1123
    %v1126 = vmul.f32 0.5, %v1125
    %v1127 = vsub.f32 1.5, %v1126
    %v1128 = vmul.f32 %v1123, %v1127
    %vm1129 = vweird.f32 %v1122
    %vm1130 = vweird.f32 %v1123
    %vm1131 = vmor %vm1129, %vm1130
    %v1132 = vsel %vm1131, %v1123, %v1128
    %v1133 = vmul.f32 %v1114, %v1132
    %v1134 = vsub.f32 1.0, %v1133
    %v1136 = vrot.slane %v1081, 7
    %v1139 = vrot.slane %v1134, 1
    %v1141 = vsel %vm294, %v90, %v1136
    %vm1142 = vcmask 1041408
    %v1143 = vsel %vm1142, %v1141, %v1139
    %1144 = vst [vmem:[#allocation7] sm:$0x7] %v1143
    // Predicated region
    $region18: #{tpu_custom_call.1} parent=1 // pred_check
      _
    $region19: #{tpu_custom_call.1} parent=1 // pred_check_branch
      %1146 = sbr.rel (0) target = $region21
    $region20: #{tpu_custom_call.1} parent=1 // pred_region
      %1148 = vsyncadd [#allocation4], 0
      %s1150 = sshll.u32 [#allocation7], 4
      %s1151 = int_to_ptr.vmem [resolvable:$true] %s1150
      %s1152 = sshll.u32 %s2, 4
      %s1153 = int_to_ptr.hbm [resolvable:$true] %s1152
      %1155 = dma.vmem_to_hbm [thread:$0]  %s1151, 64, %s1153, [#allocation4]
    $region21: #{tpu_custom_call.1} parent=1 // pred_fallthru
      _
    // Predicated region
    $region22: #{tpu_custom_call.1} parent=1 // pred_check
      _
    $region23: #{tpu_custom_call.1} parent=1 // pred_check_branch
      %1157 = sbr.rel (0) target = $region25
    $region24: #{tpu_custom_call.1} parent=1 // pred_region
      %1159 = dma.done [#allocation4], 64
    $region25: #{tpu_custom_call.1} parent=1 // pred_fallthru
      _
    %1160 = vsyncpa [#allocation3], 1
    %1161 = vsyncpa [#allocation6], 1
    %1162 = vsyncpa [#allocation4], 1

</llo_original>
